<compile_context>
chip_gen: v6e
topology: v6e:2x2x1
jax: 0.10.0
libtpu: 0.0.40
codegen_flags: <defaults>
</compile_context>

<pallas_src>
import jax
import jax.numpy as jnp
from jax.experimental import pallas as pl
from jax.experimental.pallas import tpu as pltpu


# ----------------------------------------------------------------------------
# Fused decoder-step kernel: embedding gather + (context | embedded) input
# projection + sequential LSTM recurrence + output Linear, all in VMEM.
# ----------------------------------------------------------------------------
def _decoder_kernel(idx_ref,        # SMEM (S,) int32  -- scalar-prefetched token ids
                    ctx_ref,        # VMEM (S, E)      -- squeezed/unsqueezed context
                    wih_ctx_ref,    # VMEM (E, 4H)     -- W_ih rows acting on the context half
                    wih_emb_ref,    # VMEM (E, 4H)     -- W_ih rows acting on the embedded half
                    emb_ref,        # VMEM (V, E)      -- embedding table
                    whh_ref,        # VMEM (H, 4H)
                    b_ref,          # VMEM (1, 4H)     -- b_ih + b_hh
                    wout_ref,       # VMEM (H, V)
                    bout_ref,       # VMEM (1, V)
                    h0_ref,         # VMEM (1, H)
                    c0_ref,         # VMEM (1, H)
                    out_ref,        # VMEM (S, V)
                    hn_ref,         # VMEM (1, H)
                    cn_ref,         # VMEM (1, H)
                    emb_x,          # VMEM scratch (S, E)  gathered embeddings
                    h_all,          # VMEM scratch (S, H)  all hidden states
                    ):
    S, E = ctx_ref.shape
    H = whh_ref.shape[0]

    # 1) Embedding lookup: token ids live in SMEM, table stays resident in VMEM.
    for t in range(S):                                   # S is small & static
        tok = idx_ref[t]
        emb_x[pl.ds(t, 1), :] = emb_ref[pl.ds(tok, 1), :]

    # 2) Input projection for ALL timesteps at once (concat folded into two matmuls).
    gates_x = (
        jnp.dot(ctx_ref[...], wih_ctx_ref[...], preferred_element_type=jnp.float32)
        + jnp.dot(emb_x[...], wih_emb_ref[...], preferred_element_type=jnp.float32)
        + b_ref[...]
    )                                                    # (S, 4H)

    # 3) Sequential LSTM recurrence (PyTorch gate order: i, f, g, o).
    h = h0_ref[...]                                      # (1, H)
    c = c0_ref[...]                                      # (1, H)
    for t in range(S):
        g = gates_x[t:t + 1, :] + jnp.dot(
            h, whh_ref[...], preferred_element_type=jnp.float32)      # (1, 4H)
        i_g = jax.nn.sigmoid(g[:, 0:H])
        f_g = jax.nn.sigmoid(g[:, H:2 * H])
        g_g = jnp.tanh(g[:, 2 * H:3 * H])
        o_g = jax.nn.sigmoid(g[:, 3 * H:4 * H])
        c = f_g * c + i_g * g_g
        h = o_g * jnp.tanh(c)
        h_all[pl.ds(t, 1), :] = h

    # 4) Output projection for all timesteps in one matmul.
    out_ref[...] = (jnp.dot(h_all[...], wout_ref[...],
                            preferred_element_type=jnp.float32)
                    + bout_ref[...]).astype(out_ref.dtype)
    hn_ref[...] = h.astype(hn_ref.dtype)
    cn_ref[...] = c.astype(cn_ref.dtype)


# ----------------------------------------------------------------------------
# Wrapper mirroring Decoder.forward(context, input, hidden).
#   context: (S, 1, E) f32,  input: (S, 1) int32,  hidden: (h0, c0) each (1, 1, H)
# Returns (output (S, 1, V), (h_n, c_n) each (1, 1, H)).
# ----------------------------------------------------------------------------
def decoder_forward(context, tokens, hidden, params):
    emb_tbl, w_ih, w_hh, b_ih, b_hh, w_out, b_out = params
    V, E = emb_tbl.shape
    H = w_hh.shape[0]

    # context = context.squeeze().unsqueeze(1)
    ctx = jnp.squeeze(context)[:, None, :]               # (S, 1, E)
    S = tokens.shape[0]
    ctx2 = ctx.reshape(S, E).astype(jnp.float32)
    idx = tokens.reshape(S).astype(jnp.int32)

    h0, c0 = hidden
    h0 = h0.reshape(1, H).astype(jnp.float32)
    c0 = c0.reshape(1, H).astype(jnp.float32)

    wih_ctx = w_ih[:E].astype(jnp.float32)                # (E, 4H)
    wih_emb = w_ih[E:].astype(jnp.float32)                # (E, 4H)
    bias = (b_ih + b_hh).reshape(1, 4 * H).astype(jnp.float32)
    bout = b_out.reshape(1, V).astype(jnp.float32)

    grid_spec = pltpu.PrefetchScalarGridSpec(
        num_scalar_prefetch=1,
        grid=(1,),
        in_specs=[
            pl.BlockSpec((S, E), lambda i, *_: (0, 0)),          # context
            pl.BlockSpec((E, 4 * H), lambda i, *_: (0, 0)),      # W_ih (ctx half)
            pl.BlockSpec((E, 4 * H), lambda i, *_: (0, 0)),      # W_ih (emb half)
            pl.BlockSpec((V, E), lambda i, *_: (0, 0)),          # embedding table
            pl.BlockSpec((H, 4 * H), lambda i, *_: (0, 0)),      # W_hh
            pl.BlockSpec((1, 4 * H), lambda i, *_: (0, 0)),      # bias
            pl.BlockSpec((H, V), lambda i, *_: (0, 0)),          # W_out
            pl.BlockSpec((1, V), lambda i, *_: (0, 0)),          # b_out
            pl.BlockSpec((1, H), lambda i, *_: (0, 0)),          # h0
            pl.BlockSpec((1, H), lambda i, *_: (0, 0)),          # c0
        ],
        out_specs=[
            pl.BlockSpec((S, V), lambda i, *_: (0, 0)),
            pl.BlockSpec((1, H), lambda i, *_: (0, 0)),
            pl.BlockSpec((1, H), lambda i, *_: (0, 0)),
        ],
        scratch_shapes=[
            pltpu.VMEM((S, E), jnp.float32),                     # gathered embeddings
            pltpu.VMEM((S, H), jnp.float32),                     # all hidden states
        ],
    )

    out, h_n, c_n = pl.pallas_call(
        _decoder_kernel,
        out_shape=(
            jax.ShapeDtypeStruct((S, V), jnp.float32),
            jax.ShapeDtypeStruct((1, H), jnp.float32),
            jax.ShapeDtypeStruct((1, H), jnp.float32),
        ),
        grid_spec=grid_spec,
        compiler_params=pltpu.CompilerParams(
            dimension_semantics=("arbitrary",)),
    )(idx, ctx2, wih_ctx, wih_emb, emb_tbl.astype(jnp.float32), w_hh, bias,
      w_out, bout, h0, c0)

    return out[:, None, :], (h_n[None], c_n[None])


# ----------------------------------------------------------------------------
# Pure-JAX reference (same math, straightforward) for a correctness check.
# ----------------------------------------------------------------------------
def reference_forward(context, tokens, hidden, params):
    emb_tbl, w_ih, w_hh, b_ih, b_hh, w_out, b_out = params
    H = w_hh.shape[0]
    ctx = jnp.squeeze(context)[:, None, :]                # (S, 1, E)
    embedded = emb_tbl[tokens.reshape(-1)][:, None, :]    # (S, 1, E)
    x = jnp.concatenate([ctx, embedded], axis=2)          # (S, 1, 2E)
    h, c = hidden
    h = h[0]
    c = c[0]
    outs = []
    for t in range(x.shape[0]):
        g = x[t] @ w_ih + b_ih + h @ w_hh + b_hh
        i_g = jax.nn.sigmoid(g[:, 0:H])
        f_g = jax.nn.sigmoid(g[:, H:2 * H])
        g_g = jnp.tanh(g[:, 2 * H:3 * H])
        o_g = jax.nn.sigmoid(g[:, 3 * H:4 * H])
        c = f_g * c + i_g * g_g
        h = o_g * jnp.tanh(c)
        outs.append(h)
    hs = jnp.stack(outs, axis=0)                          # (S, 1, H)
    out = hs @ w_out + b_out                              # (S, 1, V)
    return out, (h[None], c[None])


def init_params(key, output_size, hidden_size, embedding_dim):
    V, H, E = output_size, hidden_size, embedding_dim
    ks = jax.random.split(key, 7)
    s = 1.0 / jnp.sqrt(jnp.float32(H))
    emb = jax.random.normal(ks[0], (V, E), jnp.float32)
    w_ih = jax.random.uniform(ks[1], (2 * E, 4 * H), jnp.float32, -s, s)
    w_hh = jax.random.uniform(ks[2], (H, 4 * H), jnp.float32, -s, s)
    b_ih = jax.random.uniform(ks[3], (4 * H,), jnp.float32, -s, s)
    b_hh = jax.random.uniform(ks[4], (4 * H,), jnp.float32, -s, s)
    w_out = jax.random.uniform(ks[5], (H, V), jnp.float32, -s, s)
    b_out = jax.random.uniform(ks[6], (V,), jnp.float32, -s, s)
    return (emb, w_ih, w_hh, b_ih, b_hh, w_out, b_out)


if __name__ == "__main__":
    V, H, E, S = 128, 32, 32, 8                 # vocab, hidden, embedding dim, seq len
    key = jax.random.PRNGKey(0)
    kp, kc, kt, kh, kc0 = jax.random.split(key, 5)
    params = init_params(kp, V, H, E)
    context = jax.random.normal(kc, (S, 1, E), jnp.float32)
    tokens = jax.random.randint(kt, (S, 1), 0, V, jnp.int32)
    h0 = jax.random.normal(kh, (1, 1, H), jnp.float32)
    c0 = jax.random.normal(kc0, (1, 1, H), jnp.float32)

    out, (h_n, c_n) = jax.block_until_ready(
        jax.jit(decoder_forward)(context, tokens, (h0, c0), params))
    assert out.shape == (S, 1, V), out.shape
    assert h_n.shape == (1, 1, H) and c_n.shape == (1, 1, H)

    ref_out, (ref_h, ref_c) = jax.block_until_ready(
        jax.jit(reference_forward)(context, tokens, (h0, c0), params))
    assert jnp.allclose(out, ref_out, rtol=1e-3, atol=1e-3), \
        float(jnp.max(jnp.abs(out - ref_out)))
    assert jnp.allclose(h_n, ref_h, rtol=1e-3, atol=1e-3)
    assert jnp.allclose(c_n, ref_c, rtol=1e-3, atol=1e-3)

    print("KERNEL_OK")
</pallas_src>

<mosaic_0001>
module attributes {stable_mosaic.version = 11 : i64} {
  func.func @_decoder_kernel(%arg0: i32, %arg1: memref<8xi32, #tpu.memory_space<smem>>, %arg2: memref<8x32xf32, #tpu.memory_space<vmem>>, %arg3: memref<32x128xf32, #tpu.memory_space<vmem>>, %arg4: memref<32x128xf32, #tpu.memory_space<vmem>>, %arg5: memref<128x32xf32, #tpu.memory_space<vmem>>, %arg6: memref<32x128xf32, #tpu.memory_space<vmem>>, %arg7: memref<1x128xf32, #tpu.memory_space<vmem>>, %arg8: memref<32x128xf32, #tpu.memory_space<vmem>>, %arg9: memref<1x128xf32, #tpu.memory_space<vmem>>, %arg10: memref<1x32xf32, #tpu.memory_space<vmem>>, %arg11: memref<1x32xf32, #tpu.memory_space<vmem>>, %arg12: memref<8x128xf32, #tpu.memory_space<vmem>>, %arg13: memref<1x32xf32, #tpu.memory_space<vmem>>, %arg14: memref<1x32xf32, #tpu.memory_space<vmem>>, %arg15: memref<8x32xf32, #tpu.memory_space<vmem>>, %arg16: memref<8x32xf32, #tpu.memory_space<vmem>>) attributes {dimension_semantics = [#tpu.dimension_semantics<arbitrary>], iteration_bounds = array<i64: 1>, scalar_prefetch = 1 : i64, scratch_operands = 2 : i64, tpu.core_type = #tpu.core_type<tc>, window_params = [{pipeline_mode = #tpu.pipeline_mode<synchronous>, transform_indices = @transform_0, window_bounds = array<i64: 8, 32>}, {pipeline_mode = #tpu.pipeline_mode<synchronous>, transform_indices = @transform_1, window_bounds = array<i64: 32, 128>}, {pipeline_mode = #tpu.pipeline_mode<synchronous>, transform_indices = @transform_2, window_bounds = array<i64: 32, 128>}, {pipeline_mode = #tpu.pipeline_mode<synchronous>, transform_indices = @transform_3, window_bounds = array<i64: 128, 32>}, {pipeline_mode = #tpu.pipeline_mode<synchronous>, transform_indices = @transform_4, window_bounds = array<i64: 32, 128>}, {pipeline_mode = #tpu.pipeline_mode<synchronous>, transform_indices = @transform_5, window_bounds = array<i64: 1, 128>}, {pipeline_mode = #tpu.pipeline_mode<synchronous>, transform_indices = @transform_6, window_bounds = array<i64: 32, 128>}, {pipeline_mode = #tpu.pipeline_mode<synchronous>, transform_indices = @transform_7, window_bounds = array<i64: 1, 128>}, {pipeline_mode = #tpu.pipeline_mode<synchronous>, transform_indices = @transform_8, window_bounds = array<i64: 1, 32>}, {pipeline_mode = #tpu.pipeline_mode<synchronous>, transform_indices = @transform_9, window_bounds = array<i64: 1, 32>}, {pipeline_mode = #tpu.pipeline_mode<synchronous>, transform_indices = @transform_10, window_bounds = array<i64: 8, 128>}, {pipeline_mode = #tpu.pipeline_mode<synchronous>, transform_indices = @transform_11, window_bounds = array<i64: 1, 32>}, {pipeline_mode = #tpu.pipeline_mode<synchronous>, transform_indices = @transform_12, window_bounds = array<i64: 1, 32>}]} {
    %c0 = arith.constant 0 : index
    %0 = memref.load %arg1[%c0] : memref<8xi32, #tpu.memory_space<smem>>
    %1 = arith.index_cast %0 : i32 to index
    %c0_0 = arith.constant 0 : index
    %2 = vector.load %arg5[%1, %c0_0] : memref<128x32xf32, #tpu.memory_space<vmem>>, vector<1x32xf32>
    %c0_1 = arith.constant 0 : index
    %c0_2 = arith.constant 0 : index
    %3 = vector.load %arg15[%c0_1, %c0_2] : memref<8x32xf32, #tpu.memory_space<vmem>>, vector<1x32xf32>
    tpu.vector_store %arg15[%c0_1, %c0_2], %2 {strides = array<i32>} : memref<8x32xf32, #tpu.memory_space<vmem>>, vector<1x32xf32>,
    %c1 = arith.constant 1 : index
    %4 = memref.load %arg1[%c1] : memref<8xi32, #tpu.memory_space<smem>>
    %5 = arith.index_cast %4 : i32 to index
    %c0_3 = arith.constant 0 : index
    %6 = vector.load %arg5[%5, %c0_3] : memref<128x32xf32, #tpu.memory_space<vmem>>, vector<1x32xf32>
    %c1_4 = arith.constant 1 : index
    %c0_5 = arith.constant 0 : index
    %7 = vector.load %arg15[%c1_4, %c0_5] : memref<8x32xf32, #tpu.memory_space<vmem>>, vector<1x32xf32>
    tpu.vector_store %arg15[%c1_4, %c0_5], %6 {strides = array<i32>} : memref<8x32xf32, #tpu.memory_space<vmem>>, vector<1x32xf32>,
    %c2 = arith.constant 2 : index
    %8 = memref.load %arg1[%c2] : memref<8xi32, #tpu.memory_space<smem>>
    %9 = arith.index_cast %8 : i32 to index
    %c0_6 = arith.constant 0 : index
    %10 = vector.load %arg5[%9, %c0_6] : memref<128x32xf32, #tpu.memory_space<vmem>>, vector<1x32xf32>
    %c2_7 = arith.constant 2 : index
    %c0_8 = arith.constant 0 : index
    %11 = vector.load %arg15[%c2_7, %c0_8] : memref<8x32xf32, #tpu.memory_space<vmem>>, vector<1x32xf32>
    tpu.vector_store %arg15[%c2_7, %c0_8], %10 {strides = array<i32>} : memref<8x32xf32, #tpu.memory_space<vmem>>, vector<1x32xf32>,
    %c3 = arith.constant 3 : index
    %12 = memref.load %arg1[%c3] : memref<8xi32, #tpu.memory_space<smem>>
    %13 = arith.index_cast %12 : i32 to index
    %c0_9 = arith.constant 0 : index
    %14 = vector.load %arg5[%13, %c0_9] : memref<128x32xf32, #tpu.memory_space<vmem>>, vector<1x32xf32>
    %c3_10 = arith.constant 3 : index
    %c0_11 = arith.constant 0 : index
    %15 = vector.load %arg15[%c3_10, %c0_11] : memref<8x32xf32, #tpu.memory_space<vmem>>, vector<1x32xf32>
    tpu.vector_store %arg15[%c3_10, %c0_11], %14 {strides = array<i32>} : memref<8x32xf32, #tpu.memory_space<vmem>>, vector<1x32xf32>,
    %c4 = arith.constant 4 : index
    %16 = memref.load %arg1[%c4] : memref<8xi32, #tpu.memory_space<smem>>
    %17 = arith.index_cast %16 : i32 to index
    %c0_12 = arith.constant 0 : index
    %18 = vector.load %arg5[%17, %c0_12] : memref<128x32xf32, #tpu.memory_space<vmem>>, vector<1x32xf32>
    %c4_13 = arith.constant 4 : index
    %c0_14 = arith.constant 0 : index
    %19 = vector.load %arg15[%c4_13, %c0_14] : memref<8x32xf32, #tpu.memory_space<vmem>>, vector<1x32xf32>
    tpu.vector_store %arg15[%c4_13, %c0_14], %18 {strides = array<i32>} : memref<8x32xf32, #tpu.memory_space<vmem>>, vector<1x32xf32>,
    %c5 = arith.constant 5 : index
    %20 = memref.load %arg1[%c5] : memref<8xi32, #tpu.memory_space<smem>>
    %21 = arith.index_cast %20 : i32 to index
    %c0_15 = arith.constant 0 : index
    %22 = vector.load %arg5[%21, %c0_15] : memref<128x32xf32, #tpu.memory_space<vmem>>, vector<1x32xf32>
    %c5_16 = arith.constant 5 : index
    %c0_17 = arith.constant 0 : index
    %23 = vector.load %arg15[%c5_16, %c0_17] : memref<8x32xf32, #tpu.memory_space<vmem>>, vector<1x32xf32>
    tpu.vector_store %arg15[%c5_16, %c0_17], %22 {strides = array<i32>} : memref<8x32xf32, #tpu.memory_space<vmem>>, vector<1x32xf32>,
    %c6 = arith.constant 6 : index
    %24 = memref.load %arg1[%c6] : memref<8xi32, #tpu.memory_space<smem>>
    %25 = arith.index_cast %24 : i32 to index
    %c0_18 = arith.constant 0 : index
    %26 = vector.load %arg5[%25, %c0_18] : memref<128x32xf32, #tpu.memory_space<vmem>>, vector<1x32xf32>
    %c6_19 = arith.constant 6 : index
    %c0_20 = arith.constant 0 : index
    %27 = vector.load %arg15[%c6_19, %c0_20] : memref<8x32xf32, #tpu.memory_space<vmem>>, vector<1x32xf32>
    tpu.vector_store %arg15[%c6_19, %c0_20], %26 {strides = array<i32>} : memref<8x32xf32, #tpu.memory_space<vmem>>, vector<1x32xf32>,
    %c7 = arith.constant 7 : index
    %28 = memref.load %arg1[%c7] : memref<8xi32, #tpu.memory_space<smem>>
    %29 = arith.index_cast %28 : i32 to index
    %c0_21 = arith.constant 0 : index
    %30 = vector.load %arg5[%29, %c0_21] : memref<128x32xf32, #tpu.memory_space<vmem>>, vector<1x32xf32>
    %c7_22 = arith.constant 7 : index
    %c0_23 = arith.constant 0 : index
    %31 = vector.load %arg15[%c7_22, %c0_23] : memref<8x32xf32, #tpu.memory_space<vmem>>, vector<1x32xf32>
    tpu.vector_store %arg15[%c7_22, %c0_23], %30 {strides = array<i32>} : memref<8x32xf32, #tpu.memory_space<vmem>>, vector<1x32xf32>,
    %c0_24 = arith.constant 0 : index
    %c0_25 = arith.constant 0 : index
    %32 = vector.load %arg2[%c0_24, %c0_25] : memref<8x32xf32, #tpu.memory_space<vmem>>, vector<8x32xf32>
    %c0_26 = arith.constant 0 : index
    %c0_27 = arith.constant 0 : index
    %33 = vector.load %arg3[%c0_26, %c0_27] : memref<32x128xf32, #tpu.memory_space<vmem>>, vector<32x128xf32>
    %cst = arith.constant dense<0.000000e+00> : vector<8x128xf32>
    %34 = tpu.matmul %32, %33, %cst {dimension_numbers = #tpu.dot_dimension_numbers<[1], [0], [0], [1], [0, 0, 1, 1], [], []>} : vector<8x32xf32>, vector<32x128xf32>, vector<8x128xf32> -> vector<8x128xf32>
    %c0_28 = arith.constant 0 : index
    %c0_29 = arith.constant 0 : index
    %35 = vector.load %arg15[%c0_28, %c0_29] : memref<8x32xf32, #tpu.memory_space<vmem>>, vector<8x32xf32>
    %c0_30 = arith.constant 0 : index
    %c0_31 = arith.constant 0 : index
    %36 = vector.load %arg4[%c0_30, %c0_31] : memref<32x128xf32, #tpu.memory_space<vmem>>, vector<32x128xf32>
    %cst_32 = arith.constant dense<0.000000e+00> : vector<8x128xf32>
    %37 = tpu.matmul %35, %36, %cst_32 {dimension_numbers = #tpu.dot_dimension_numbers<[1], [0], [0], [1], [0, 0, 1, 1], [], []>} : vector<8x32xf32>, vector<32x128xf32>, vector<8x128xf32> -> vector<8x128xf32>
    %38 = arith.addf %34, %37 : vector<8x128xf32>
    %c0_33 = arith.constant 0 : index
    %c0_34 = arith.constant 0 : index
    %39 = vector.load %arg7[%c0_33, %c0_34] : memref<1x128xf32, #tpu.memory_space<vmem>>, vector<1x128xf32>
    %40 = vector.broadcast %39 : vector<1x128xf32> to vector<8x128xf32>
    %41 = arith.addf %38, %40 : vector<8x128xf32>
    %c0_35 = arith.constant 0 : index
    %c0_36 = arith.constant 0 : index
    %42 = vector.load %arg10[%c0_35, %c0_36] : memref<1x32xf32, #tpu.memory_space<vmem>>, vector<1x32xf32>
    %c0_37 = arith.constant 0 : index
    %c0_38 = arith.constant 0 : index
    %43 = vector.load %arg11[%c0_37, %c0_38] : memref<1x32xf32, #tpu.memory_space<vmem>>, vector<1x32xf32>
    %44 = vector.extract_strided_slice %41 {offsets = [0, 0], sizes = [1, 128], strides = [1, 1]} : vector<8x128xf32> to vector<1x128xf32>
    %c0_39 = arith.constant 0 : index
    %c0_40 = arith.constant 0 : index
    %45 = vector.load %arg6[%c0_39, %c0_40] : memref<32x128xf32, #tpu.memory_space<vmem>>, vector<32x128xf32>
    %cst_41 = arith.constant dense<0.000000e+00> : vector<1x128xf32>
    %46 = tpu.matmul %42, %45, %cst_41 {dimension_numbers = #tpu.dot_dimension_numbers<[1], [0], [0], [1], [0, 0, 1, 1], [], []>} : vector<1x32xf32>, vector<32x128xf32>, vector<1x128xf32> -> vector<1x128xf32>
    %47 = arith.addf %44, %46 : vector<1x128xf32>
    %48 = vector.extract_strided_slice %47 {offsets = [0, 0], sizes = [1, 32], strides = [1, 1]} : vector<1x128xf32> to vector<1x32xf32>
    %49 = arith.negf %48 : vector<1x32xf32>
    %50 = math.exp %49 : vector<1x32xf32>
    %cst_42 = arith.constant 1.000000e+00 : f32
    %51 = vector.broadcast %cst_42 : f32 to vector<1x32xf32>
    %52 = arith.addf %51, %50 : vector<1x32xf32>
    %53 = arith.divf %51, %52 : vector<1x32xf32>
    %54 = vector.extract_strided_slice %47 {offsets = [0, 32], sizes = [1, 32], strides = [1, 1]} : vector<1x128xf32> to vector<1x32xf32>
    %55 = arith.negf %54 : vector<1x32xf32>
    %56 = math.exp %55 : vector<1x32xf32>
    %cst_43 = arith.constant 1.000000e+00 : f32
    %57 = vector.broadcast %cst_43 : f32 to vector<1x32xf32>
    %58 = arith.addf %57, %56 : vector<1x32xf32>
    %59 = arith.divf %57, %58 : vector<1x32xf32>
    %60 = vector.extract_strided_slice %47 {offsets = [0, 64], sizes = [1, 32], strides = [1, 1]} : vector<1x128xf32> to vector<1x32xf32>
    %61 = math.tanh %60 : vector<1x32xf32>
    %62 = vector.extract_strided_slice %47 {offsets = [0, 96], sizes = [1, 32], strides = [1, 1]} : vector<1x128xf32> to vector<1x32xf32>
    %63 = arith.negf %62 : vector<1x32xf32>
    %64 = math.exp %63 : vector<1x32xf32>
    %cst_44 = arith.constant 1.000000e+00 : f32
    %65 = vector.broadcast %cst_44 : f32 to vector<1x32xf32>
    %66 = arith.addf %65, %64 : vector<1x32xf32>
    %67 = arith.divf %65, %66 : vector<1x32xf32>
    %68 = arith.mulf %59, %43 : vector<1x32xf32>
    %69 = arith.mulf %53, %61 : vector<1x32xf32>
    %70 = arith.addf %68, %69 : vector<1x32xf32>
    %71 = math.tanh %70 : vector<1x32xf32>
    %72 = arith.mulf %67, %71 : vector<1x32xf32>
    %c0_45 = arith.constant 0 : index
    %c0_46 = arith.constant 0 : index
    %73 = vector.load %arg16[%c0_45, %c0_46] : memref<8x32xf32, #tpu.memory_space<vmem>>, vector<1x32xf32>
    tpu.vector_store %arg16[%c0_45, %c0_46], %72 {strides = array<i32>} : memref<8x32xf32, #tpu.memory_space<vmem>>, vector<1x32xf32>,
    %74 = vector.extract_strided_slice %41 {offsets = [1, 0], sizes = [1, 128], strides = [1, 1]} : vector<8x128xf32> to vector<1x128xf32>
    %c0_47 = arith.constant 0 : index
    %c0_48 = arith.constant 0 : index
    %75 = vector.load %arg6[%c0_47, %c0_48] : memref<32x128xf32, #tpu.memory_space<vmem>>, vector<32x128xf32>
    %cst_49 = arith.constant dense<0.000000e+00> : vector<1x128xf32>
    %76 = tpu.matmul %72, %75, %cst_49 {dimension_numbers = #tpu.dot_dimension_numbers<[1], [0], [0], [1], [0, 0, 1, 1], [], []>} : vector<1x32xf32>, vector<32x128xf32>, vector<1x128xf32> -> vector<1x128xf32>
    %77 = arith.addf %74, %76 : vector<1x128xf32>
    %78 = vector.extract_strided_slice %77 {offsets = [0, 0], sizes = [1, 32], strides = [1, 1]} : vector<1x128xf32> to vector<1x32xf32>
    %79 = arith.negf %78 : vector<1x32xf32>
    %80 = math.exp %79 : vector<1x32xf32>
    %cst_50 = arith.constant 1.000000e+00 : f32
    %81 = vector.broadcast %cst_50 : f32 to vector<1x32xf32>
    %82 = arith.addf %81, %80 : vector<1x32xf32>
    %83 = arith.divf %81, %82 : vector<1x32xf32>
    %84 = vector.extract_strided_slice %77 {offsets = [0, 32], sizes = [1, 32], strides = [1, 1]} : vector<1x128xf32> to vector<1x32xf32>
    %85 = arith.negf %84 : vector<1x32xf32>
    %86 = math.exp %85 : vector<1x32xf32>
    %cst_51 = arith.constant 1.000000e+00 : f32
    %87 = vector.broadcast %cst_51 : f32 to vector<1x32xf32>
    %88 = arith.addf %87, %86 : vector<1x32xf32>
    %89 = arith.divf %87, %88 : vector<1x32xf32>
    %90 = vector.extract_strided_slice %77 {offsets = [0, 64], sizes = [1, 32], strides = [1, 1]} : vector<1x128xf32> to vector<1x32xf32>
    %91 = math.tanh %90 : vector<1x32xf32>
    %92 = vector.extract_strided_slice %77 {offsets = [0, 96], sizes = [1, 32], strides = [1, 1]} : vector<1x128xf32> to vector<1x32xf32>
    %93 = arith.negf %92 : vector<1x32xf32>
    %94 = math.exp %93 : vector<1x32xf32>
    %cst_52 = arith.constant 1.000000e+00 : f32
    %95 = vector.broadcast %cst_52 : f32 to vector<1x32xf32>
    %96 = arith.addf %95, %94 : vector<1x32xf32>
    %97 = arith.divf %95, %96 : vector<1x32xf32>
    %98 = arith.mulf %89, %70 : vector<1x32xf32>
    %99 = arith.mulf %83, %91 : vector<1x32xf32>
    %100 = arith.addf %98, %99 : vector<1x32xf32>
    %101 = math.tanh %100 : vector<1x32xf32>
    %102 = arith.mulf %97, %101 : vector<1x32xf32>
    %c1_53 = arith.constant 1 : index
    %c0_54 = arith.constant 0 : index
    %103 = vector.load %arg16[%c1_53, %c0_54] : memref<8x32xf32, #tpu.memory_space<vmem>>, vector<1x32xf32>
    tpu.vector_store %arg16[%c1_53, %c0_54], %102 {strides = array<i32>} : memref<8x32xf32, #tpu.memory_space<vmem>>, vector<1x32xf32>,
    %104 = vector.extract_strided_slice %41 {offsets = [2, 0], sizes = [1, 128], strides = [1, 1]} : vector<8x128xf32> to vector<1x128xf32>
    %c0_55 = arith.constant 0 : index
    %c0_56 = arith.constant 0 : index
    %105 = vector.load %arg6[%c0_55, %c0_56] : memref<32x128xf32, #tpu.memory_space<vmem>>, vector<32x128xf32>
    %cst_57 = arith.constant dense<0.000000e+00> : vector<1x128xf32>
    %106 = tpu.matmul %102, %105, %cst_57 {dimension_numbers = #tpu.dot_dimension_numbers<[1], [0], [0], [1], [0, 0, 1, 1], [], []>} : vector<1x32xf32>, vector<32x128xf32>, vector<1x128xf32> -> vector<1x128xf32>
    %107 = arith.addf %104, %106 : vector<1x128xf32>
    %108 = vector.extract_strided_slice %107 {offsets = [0, 0], sizes = [1, 32], strides = [1, 1]} : vector<1x128xf32> to vector<1x32xf32>
    %109 = arith.negf %108 : vector<1x32xf32>
    %110 = math.exp %109 : vector<1x32xf32>
    %cst_58 = arith.constant 1.000000e+00 : f32
    %111 = vector.broadcast %cst_58 : f32 to vector<1x32xf32>
    %112 = arith.addf %111, %110 : vector<1x32xf32>
    %113 = arith.divf %111, %112 : vector<1x32xf32>
    %114 = vector.extract_strided_slice %107 {offsets = [0, 32], sizes = [1, 32], strides = [1, 1]} : vector<1x128xf32> to vector<1x32xf32>
    %115 = arith.negf %114 : vector<1x32xf32>
    %116 = math.exp %115 : vector<1x32xf32>
    %cst_59 = arith.constant 1.000000e+00 : f32
    %117 = vector.broadcast %cst_59 : f32 to vector<1x32xf32>
    %118 = arith.addf %117, %116 : vector<1x32xf32>
    %119 = arith.divf %117, %118 : vector<1x32xf32>
    %120 = vector.extract_strided_slice %107 {offsets = [0, 64], sizes = [1, 32], strides = [1, 1]} : vector<1x128xf32> to vector<1x32xf32>
    %121 = math.tanh %120 : vector<1x32xf32>
    %122 = vector.extract_strided_slice %107 {offsets = [0, 96], sizes = [1, 32], strides = [1, 1]} : vector<1x128xf32> to vector<1x32xf32>
    %123 = arith.negf %122 : vector<1x32xf32>
    %124 = math.exp %123 : vector<1x32xf32>
    %cst_60 = arith.constant 1.000000e+00 : f32
    %125 = vector.broadcast %cst_60 : f32 to vector<1x32xf32>
    %126 = arith.addf %125, %124 : vector<1x32xf32>
    %127 = arith.divf %125, %126 : vector<1x32xf32>
    %128 = arith.mulf %119, %100 : vector<1x32xf32>
    %129 = arith.mulf %113, %121 : vector<1x32xf32>
    %130 = arith.addf %128, %129 : vector<1x32xf32>
    %131 = math.tanh %130 : vector<1x32xf32>
    %132 = arith.mulf %127, %131 : vector<1x32xf32>
    %c2_61 = arith.constant 2 : index
    %c0_62 = arith.constant 0 : index
    %133 = vector.load %arg16[%c2_61, %c0_62] : memref<8x32xf32, #tpu.memory_space<vmem>>, vector<1x32xf32>
    tpu.vector_store %arg16[%c2_61, %c0_62], %132 {strides = array<i32>} : memref<8x32xf32, #tpu.memory_space<vmem>>, vector<1x32xf32>,
    %134 = vector.extract_strided_slice %41 {offsets = [3, 0], sizes = [1, 128], strides = [1, 1]} : vector<8x128xf32> to vector<1x128xf32>
    %c0_63 = arith.constant 0 : index
    %c0_64 = arith.constant 0 : index
    %135 = vector.load %arg6[%c0_63, %c0_64] : memref<32x128xf32, #tpu.memory_space<vmem>>, vector<32x128xf32>
    %cst_65 = arith.constant dense<0.000000e+00> : vector<1x128xf32>
    %136 = tpu.matmul %132, %135, %cst_65 {dimension_numbers = #tpu.dot_dimension_numbers<[1], [0], [0], [1], [0, 0, 1, 1], [], []>} : vector<1x32xf32>, vector<32x128xf32>, vector<1x128xf32> -> vector<1x128xf32>
    %137 = arith.addf %134, %136 : vector<1x128xf32>
    %138 = vector.extract_strided_slice %137 {offsets = [0, 0], sizes = [1, 32], strides = [1, 1]} : vector<1x128xf32> to vector<1x32xf32>
    %139 = arith.negf %138 : vector<1x32xf32>
    %140 = math.exp %139 : vector<1x32xf32>
    %cst_66 = arith.constant 1.000000e+00 : f32
    %141 = vector.broadcast %cst_66 : f32 to vector<1x32xf32>
    %142 = arith.addf %141, %140 : vector<1x32xf32>
    %143 = arith.divf %141, %142 : vector<1x32xf32>
    %144 = vector.extract_strided_slice %137 {offsets = [0, 32], sizes = [1, 32], strides = [1, 1]} : vector<1x128xf32> to vector<1x32xf32>
    %145 = arith.negf %144 : vector<1x32xf32>
    %146 = math.exp %145 : vector<1x32xf32>
    %cst_67 = arith.constant 1.000000e+00 : f32
    %147 = vector.broadcast %cst_67 : f32 to vector<1x32xf32>
    %148 = arith.addf %147, %146 : vector<1x32xf32>
    %149 = arith.divf %147, %148 : vector<1x32xf32>
    %150 = vector.extract_strided_slice %137 {offsets = [0, 64], sizes = [1, 32], strides = [1, 1]} : vector<1x128xf32> to vector<1x32xf32>
    %151 = math.tanh %150 : vector<1x32xf32>
    %152 = vector.extract_strided_slice %137 {offsets = [0, 96], sizes = [1, 32], strides = [1, 1]} : vector<1x128xf32> to vector<1x32xf32>
    %153 = arith.negf %152 : vector<1x32xf32>
    %154 = math.exp %153 : vector<1x32xf32>
    %cst_68 = arith.constant 1.000000e+00 : f32
    %155 = vector.broadcast %cst_68 : f32 to vector<1x32xf32>
    %156 = arith.addf %155, %154 : vector<1x32xf32>
    %157 = arith.divf %155, %156 : vector<1x32xf32>
    %158 = arith.mulf %149, %130 : vector<1x32xf32>
    %159 = arith.mulf %143, %151 : vector<1x32xf32>
    %160 = arith.addf %158, %159 : vector<1x32xf32>
    %161 = math.tanh %160 : vector<1x32xf32>
    %162 = arith.mulf %157, %161 : vector<1x32xf32>
    %c3_69 = arith.constant 3 : index
    %c0_70 = arith.constant 0 : index
    %163 = vector.load %arg16[%c3_69, %c0_70] : memref<8x32xf32, #tpu.memory_space<vmem>>, vector<1x32xf32>
    tpu.vector_store %arg16[%c3_69, %c0_70], %162 {strides = array<i32>} : memref<8x32xf32, #tpu.memory_space<vmem>>, vector<1x32xf32>,
    %164 = vector.extract_strided_slice %41 {offsets = [4, 0], sizes = [1, 128], strides = [1, 1]} : vector<8x128xf32> to vector<1x128xf32>
    %c0_71 = arith.constant 0 : index
    %c0_72 = arith.constant 0 : index
    %165 = vector.load %arg6[%c0_71, %c0_72] : memref<32x128xf32, #tpu.memory_space<vmem>>, vector<32x128xf32>
    %cst_73 = arith.constant dense<0.000000e+00> : vector<1x128xf32>
    %166 = tpu.matmul %162, %165, %cst_73 {dimension_numbers = #tpu.dot_dimension_numbers<[1], [0], [0], [1], [0, 0, 1, 1], [], []>} : vector<1x32xf32>, vector<32x128xf32>, vector<1x128xf32> -> vector<1x128xf32>
    %167 = arith.addf %164, %166 : vector<1x128xf32>
    %168 = vector.extract_strided_slice %167 {offsets = [0, 0], sizes = [1, 32], strides = [1, 1]} : vector<1x128xf32> to vector<1x32xf32>
    %169 = arith.negf %168 : vector<1x32xf32>
    %170 = math.exp %169 : vector<1x32xf32>
    %cst_74 = arith.constant 1.000000e+00 : f32
    %171 = vector.broadcast %cst_74 : f32 to vector<1x32xf32>
    %172 = arith.addf %171, %170 : vector<1x32xf32>
    %173 = arith.divf %171, %172 : vector<1x32xf32>
    %174 = vector.extract_strided_slice %167 {offsets = [0, 32], sizes = [1, 32], strides = [1, 1]} : vector<1x128xf32> to vector<1x32xf32>
    %175 = arith.negf %174 : vector<1x32xf32>
    %176 = math.exp %175 : vector<1x32xf32>
    %cst_75 = arith.constant 1.000000e+00 : f32
    %177 = vector.broadcast %cst_75 : f32 to vector<1x32xf32>
    %178 = arith.addf %177, %176 : vector<1x32xf32>
    %179 = arith.divf %177, %178 : vector<1x32xf32>
    %180 = vector.extract_strided_slice %167 {offsets = [0, 64], sizes = [1, 32], strides = [1, 1]} : vector<1x128xf32> to vector<1x32xf32>
    %181 = math.tanh %180 : vector<1x32xf32>
    %182 = vector.extract_strided_slice %167 {offsets = [0, 96], sizes = [1, 32], strides = [1, 1]} : vector<1x128xf32> to vector<1x32xf32>
    %183 = arith.negf %182 : vector<1x32xf32>
    %184 = math.exp %183 : vector<1x32xf32>
    %cst_76 = arith.constant 1.000000e+00 : f32
    %185 = vector.broadcast %cst_76 : f32 to vector<1x32xf32>
    %186 = arith.addf %185, %184 : vector<1x32xf32>
    %187 = arith.divf %185, %186 : vector<1x32xf32>
    %188 = arith.mulf %179, %160 : vector<1x32xf32>
    %189 = arith.mulf %173, %181 : vector<1x32xf32>
    %190 = arith.addf %188, %189 : vector<1x32xf32>
    %191 = math.tanh %190 : vector<1x32xf32>
    %192 = arith.mulf %187, %191 : vector<1x32xf32>
    %c4_77 = arith.constant 4 : index
    %c0_78 = arith.constant 0 : index
    %193 = vector.load %arg16[%c4_77, %c0_78] : memref<8x32xf32, #tpu.memory_space<vmem>>, vector<1x32xf32>
    tpu.vector_store %arg16[%c4_77, %c0_78], %192 {strides = array<i32>} : memref<8x32xf32, #tpu.memory_space<vmem>>, vector<1x32xf32>,
    %194 = vector.extract_strided_slice %41 {offsets = [5, 0], sizes = [1, 128], strides = [1, 1]} : vector<8x128xf32> to vector<1x128xf32>
    %c0_79 = arith.constant 0 : index
    %c0_80 = arith.constant 0 : index
    %195 = vector.load %arg6[%c0_79, %c0_80] : memref<32x128xf32, #tpu.memory_space<vmem>>, vector<32x128xf32>
    %cst_81 = arith.constant dense<0.000000e+00> : vector<1x128xf32>
    %196 = tpu.matmul %192, %195, %cst_81 {dimension_numbers = #tpu.dot_dimension_numbers<[1], [0], [0], [1], [0, 0, 1, 1], [], []>} : vector<1x32xf32>, vector<32x128xf32>, vector<1x128xf32> -> vector<1x128xf32>
    %197 = arith.addf %194, %196 : vector<1x128xf32>
    %198 = vector.extract_strided_slice %197 {offsets = [0, 0], sizes = [1, 32], strides = [1, 1]} : vector<1x128xf32> to vector<1x32xf32>
    %199 = arith.negf %198 : vector<1x32xf32>
    %200 = math.exp %199 : vector<1x32xf32>
    %cst_82 = arith.constant 1.000000e+00 : f32
    %201 = vector.broadcast %cst_82 : f32 to vector<1x32xf32>
    %202 = arith.addf %201, %200 : vector<1x32xf32>
    %203 = arith.divf %201, %202 : vector<1x32xf32>
    %204 = vector.extract_strided_slice %197 {offsets = [0, 32], sizes = [1, 32], strides = [1, 1]} : vector<1x128xf32> to vector<1x32xf32>
    %205 = arith.negf %204 : vector<1x32xf32>
    %206 = math.exp %205 : vector<1x32xf32>
    %cst_83 = arith.constant 1.000000e+00 : f32
    %207 = vector.broadcast %cst_83 : f32 to vector<1x32xf32>
    %208 = arith.addf %207, %206 : vector<1x32xf32>
    %209 = arith.divf %207, %208 : vector<1x32xf32>
    %210 = vector.extract_strided_slice %197 {offsets = [0, 64], sizes = [1, 32], strides = [1, 1]} : vector<1x128xf32> to vector<1x32xf32>
    %211 = math.tanh %210 : vector<1x32xf32>
    %212 = vector.extract_strided_slice %197 {offsets = [0, 96], sizes = [1, 32], strides = [1, 1]} : vector<1x128xf32> to vector<1x32xf32>
    %213 = arith.negf %212 : vector<1x32xf32>
    %214 = math.exp %213 : vector<1x32xf32>
    %cst_84 = arith.constant 1.000000e+00 : f32
    %215 = vector.broadcast %cst_84 : f32 to vector<1x32xf32>
    %216 = arith.addf %215, %214 : vector<1x32xf32>
    %217 = arith.divf %215, %216 : vector<1x32xf32>
    %218 = arith.mulf %209, %190 : vector<1x32xf32>
    %219 = arith.mulf %203, %211 : vector<1x32xf32>
    %220 = arith.addf %218, %219 : vector<1x32xf32>
    %221 = math.tanh %220 : vector<1x32xf32>
    %222 = arith.mulf %217, %221 : vector<1x32xf32>
    %c5_85 = arith.constant 5 : index
    %c0_86 = arith.constant 0 : index
    %223 = vector.load %arg16[%c5_85, %c0_86] : memref<8x32xf32, #tpu.memory_space<vmem>>, vector<1x32xf32>
    tpu.vector_store %arg16[%c5_85, %c0_86], %222 {strides = array<i32>} : memref<8x32xf32, #tpu.memory_space<vmem>>, vector<1x32xf32>,
    %224 = vector.extract_strided_slice %41 {offsets = [6, 0], sizes = [1, 128], strides = [1, 1]} : vector<8x128xf32> to vector<1x128xf32>
    %c0_87 = arith.constant 0 : index
    %c0_88 = arith.constant 0 : index
    %225 = vector.load %arg6[%c0_87, %c0_88] : memref<32x128xf32, #tpu.memory_space<vmem>>, vector<32x128xf32>
    %cst_89 = arith.constant dense<0.000000e+00> : vector<1x128xf32>
    %226 = tpu.matmul %222, %225, %cst_89 {dimension_numbers = #tpu.dot_dimension_numbers<[1], [0], [0], [1], [0, 0, 1, 1], [], []>} : vector<1x32xf32>, vector<32x128xf32>, vector<1x128xf32> -> vector<1x128xf32>
    %227 = arith.addf %224, %226 : vector<1x128xf32>
    %228 = vector.extract_strided_slice %227 {offsets = [0, 0], sizes = [1, 32], strides = [1, 1]} : vector<1x128xf32> to vector<1x32xf32>
    %229 = arith.negf %228 : vector<1x32xf32>
    %230 = math.exp %229 : vector<1x32xf32>
    %cst_90 = arith.constant 1.000000e+00 : f32
    %231 = vector.broadcast %cst_90 : f32 to vector<1x32xf32>
    %232 = arith.addf %231, %230 : vector<1x32xf32>
    %233 = arith.divf %231, %232 : vector<1x32xf32>
    %234 = vector.extract_strided_slice %227 {offsets = [0, 32], sizes = [1, 32], strides = [1, 1]} : vector<1x128xf32> to vector<1x32xf32>
    %235 = arith.negf %234 : vector<1x32xf32>
    %236 = math.exp %235 : vector<1x32xf32>
    %cst_91 = arith.constant 1.000000e+00 : f32
    %237 = vector.broadcast %cst_91 : f32 to vector<1x32xf32>
    %238 = arith.addf %237, %236 : vector<1x32xf32>
    %239 = arith.divf %237, %238 : vector<1x32xf32>
    %240 = vector.extract_strided_slice %227 {offsets = [0, 64], sizes = [1, 32], strides = [1, 1]} : vector<1x128xf32> to vector<1x32xf32>
    %241 = math.tanh %240 : vector<1x32xf32>
    %242 = vector.extract_strided_slice %227 {offsets = [0, 96], sizes = [1, 32], strides = [1, 1]} : vector<1x128xf32> to vector<1x32xf32>
    %243 = arith.negf %242 : vector<1x32xf32>
    %244 = math.exp %243 : vector<1x32xf32>
    %cst_92 = arith.constant 1.000000e+00 : f32
    %245 = vector.broadcast %cst_92 : f32 to vector<1x32xf32>
    %246 = arith.addf %245, %244 : vector<1x32xf32>
    %247 = arith.divf %245, %246 : vector<1x32xf32>
    %248 = arith.mulf %239, %220 : vector<1x32xf32>
    %249 = arith.mulf %233, %241 : vector<1x32xf32>
    %250 = arith.addf %248, %249 : vector<1x32xf32>
    %251 = math.tanh %250 : vector<1x32xf32>
    %252 = arith.mulf %247, %251 : vector<1x32xf32>
    %c6_93 = arith.constant 6 : index
    %c0_94 = arith.constant 0 : index
    %253 = vector.load %arg16[%c6_93, %c0_94] : memref<8x32xf32, #tpu.memory_space<vmem>>, vector<1x32xf32>
    tpu.vector_store %arg16[%c6_93, %c0_94], %252 {strides = array<i32>} : memref<8x32xf32, #tpu.memory_space<vmem>>, vector<1x32xf32>,
    %254 = vector.extract_strided_slice %41 {offsets = [7, 0], sizes = [1, 128], strides = [1, 1]} : vector<8x128xf32> to vector<1x128xf32>
    %c0_95 = arith.constant 0 : index
    %c0_96 = arith.constant 0 : index
    %255 = vector.load %arg6[%c0_95, %c0_96] : memref<32x128xf32, #tpu.memory_space<vmem>>, vector<32x128xf32>
    %cst_97 = arith.constant dense<0.000000e+00> : vector<1x128xf32>
    %256 = tpu.matmul %252, %255, %cst_97 {dimension_numbers = #tpu.dot_dimension_numbers<[1], [0], [0], [1], [0, 0, 1, 1], [], []>} : vector<1x32xf32>, vector<32x128xf32>, vector<1x128xf32> -> vector<1x128xf32>
    %257 = arith.addf %254, %256 : vector<1x128xf32>
    %258 = vector.extract_strided_slice %257 {offsets = [0, 0], sizes = [1, 32], strides = [1, 1]} : vector<1x128xf32> to vector<1x32xf32>
    %259 = arith.negf %258 : vector<1x32xf32>
    %260 = math.exp %259 : vector<1x32xf32>
    %cst_98 = arith.constant 1.000000e+00 : f32
    %261 = vector.broadcast %cst_98 : f32 to vector<1x32xf32>
    %262 = arith.addf %261, %260 : vector<1x32xf32>
    %263 = arith.divf %261, %262 : vector<1x32xf32>
    %264 = vector.extract_strided_slice %257 {offsets = [0, 32], sizes = [1, 32], strides = [1, 1]} : vector<1x128xf32> to vector<1x32xf32>
    %265 = arith.negf %264 : vector<1x32xf32>
    %266 = math.exp %265 : vector<1x32xf32>
    %cst_99 = arith.constant 1.000000e+00 : f32
    %267 = vector.broadcast %cst_99 : f32 to vector<1x32xf32>
    %268 = arith.addf %267, %266 : vector<1x32xf32>
    %269 = arith.divf %267, %268 : vector<1x32xf32>
    %270 = vector.extract_strided_slice %257 {offsets = [0, 64], sizes = [1, 32], strides = [1, 1]} : vector<1x128xf32> to vector<1x32xf32>
    %271 = math.tanh %270 : vector<1x32xf32>
    %272 = vector.extract_strided_slice %257 {offsets = [0, 96], sizes = [1, 32], strides = [1, 1]} : vector<1x128xf32> to vector<1x32xf32>
    %273 = arith.negf %272 : vector<1x32xf32>
    %274 = math.exp %273 : vector<1x32xf32>
    %cst_100 = arith.constant 1.000000e+00 : f32
    %275 = vector.broadcast %cst_100 : f32 to vector<1x32xf32>
    %276 = arith.addf %275, %274 : vector<1x32xf32>
    %277 = arith.divf %275, %276 : vector<1x32xf32>
    %278 = arith.mulf %269, %250 : vector<1x32xf32>
    %279 = arith.mulf %263, %271 : vector<1x32xf32>
    %280 = arith.addf %278, %279 : vector<1x32xf32>
    %281 = math.tanh %280 : vector<1x32xf32>
    %282 = arith.mulf %277, %281 : vector<1x32xf32>
    %c7_101 = arith.constant 7 : index
    %c0_102 = arith.constant 0 : index
    %283 = vector.load %arg16[%c7_101, %c0_102] : memref<8x32xf32, #tpu.memory_space<vmem>>, vector<1x32xf32>
    tpu.vector_store %arg16[%c7_101, %c0_102], %282 {strides = array<i32>} : memref<8x32xf32, #tpu.memory_space<vmem>>, vector<1x32xf32>,
    %c0_103 = arith.constant 0 : index
    %c0_104 = arith.constant 0 : index
    %284 = vector.load %arg16[%c0_103, %c0_104] : memref<8x32xf32, #tpu.memory_space<vmem>>, vector<8x32xf32>
    %c0_105 = arith.constant 0 : index
    %c0_106 = arith.constant 0 : index
    %285 = vector.load %arg8[%c0_105, %c0_106] : memref<32x128xf32, #tpu.memory_space<vmem>>, vector<32x128xf32>
    %cst_107 = arith.constant dense<0.000000e+00> : vector<8x128xf32>
    %286 = tpu.matmul %284, %285, %cst_107 {dimension_numbers = #tpu.dot_dimension_numbers<[1], [0], [0], [1], [0, 0, 1, 1], [], []>} : vector<8x32xf32>, vector<32x128xf32>, vector<8x128xf32> -> vector<8x128xf32>
    %c0_108 = arith.constant 0 : index
    %c0_109 = arith.constant 0 : index
    %287 = vector.load %arg9[%c0_108, %c0_109] : memref<1x128xf32, #tpu.memory_space<vmem>>, vector<1x128xf32>
    %288 = vector.broadcast %287 : vector<1x128xf32> to vector<8x128xf32>
    %289 = arith.addf %286, %288 : vector<8x128xf32>
    %c0_110 = arith.constant 0 : index
    %c0_111 = arith.constant 0 : index
    %290 = vector.load %arg12[%c0_110, %c0_111] : memref<8x128xf32, #tpu.memory_space<vmem>>, vector<8x128xf32>
    tpu.vector_store %arg12[%c0_110, %c0_111], %289 {strides = array<i32>} : memref<8x128xf32, #tpu.memory_space<vmem>>, vector<8x128xf32>,
    %c0_112 = arith.constant 0 : index
    %c0_113 = arith.constant 0 : index
    %291 = vector.load %arg13[%c0_112, %c0_113] : memref<1x32xf32, #tpu.memory_space<vmem>>, vector<1x32xf32>
    tpu.vector_store %arg13[%c0_112, %c0_113], %282 {strides = array<i32>} : memref<1x32xf32, #tpu.memory_space<vmem>>, vector<1x32xf32>,
    %c0_114 = arith.constant 0 : index
    %c0_115 = arith.constant 0 : index
    %292 = vector.load %arg14[%c0_114, %c0_115] : memref<1x32xf32, #tpu.memory_space<vmem>>, vector<1x32xf32>
    tpu.vector_store %arg14[%c0_114, %c0_115], %280 {strides = array<i32>} : memref<1x32xf32, #tpu.memory_space<vmem>>, vector<1x32xf32>,
    return
  }
  func.func @transform_0(%arg0: i32, %arg1: memref<8xi32, #tpu.memory_space<smem>>) -> (i32, i32) {
    %c0_i32 = arith.constant 0 : i32
    %c0_i32_0 = arith.constant 0 : i32
    %c0_i32_1 = arith.constant 0 : i32
    return %c0_i32, %c0_i32_0 : i32, i32
  }
  func.func @transform_1(%arg0: i32, %arg1: memref<8xi32, #tpu.memory_space<smem>>) -> (i32, i32) {
    %c0_i32 = arith.constant 0 : i32
    %c0_i32_0 = arith.constant 0 : i32
    %c0_i32_1 = arith.constant 0 : i32
    return %c0_i32, %c0_i32_0 : i32, i32
  }
  func.func @transform_2(%arg0: i32, %arg1: memref<8xi32, #tpu.memory_space<smem>>) -> (i32, i32) {
    %c0_i32 = arith.constant 0 : i32
    %c0_i32_0 = arith.constant 0 : i32
    %c0_i32_1 = arith.constant 0 : i32
    return %c0_i32, %c0_i32_0 : i32, i32
  }
  func.func @transform_3(%arg0: i32, %arg1: memref<8xi32, #tpu.memory_space<smem>>) -> (i32, i32) {
    %c0_i32 = arith.constant 0 : i32
    %c0_i32_0 = arith.constant 0 : i32
    %c0_i32_1 = arith.constant 0 : i32
    return %c0_i32, %c0_i32_0 : i32, i32
  }
  func.func @transform_4(%arg0: i32, %arg1: memref<8xi32, #tpu.memory_space<smem>>) -> (i32, i32) {
    %c0_i32 = arith.constant 0 : i32
    %c0_i32_0 = arith.constant 0 : i32
    %c0_i32_1 = arith.constant 0 : i32
    return %c0_i32, %c0_i32_0 : i32, i32
  }
  func.func @transform_5(%arg0: i32, %arg1: memref<8xi32, #tpu.memory_space<smem>>) -> (i32, i32) {
    %c0_i32 = arith.constant 0 : i32
    %c0_i32_0 = arith.constant 0 : i32
    %c0_i32_1 = arith.constant 0 : i32
    return %c0_i32, %c0_i32_0 : i32, i32
  }
  func.func @transform_6(%arg0: i32, %arg1: memref<8xi32, #tpu.memory_space<smem>>) -> (i32, i32) {
    %c0_i32 = arith.constant 0 : i32
    %c0_i32_0 = arith.constant 0 : i32
    %c0_i32_1 = arith.constant 0 : i32
    return %c0_i32, %c0_i32_0 : i32, i32
  }
  func.func @transform_7(%arg0: i32, %arg1: memref<8xi32, #tpu.memory_space<smem>>) -> (i32, i32) {
    %c0_i32 = arith.constant 0 : i32
    %c0_i32_0 = arith.constant 0 : i32
    %c0_i32_1 = arith.constant 0 : i32
    return %c0_i32, %c0_i32_0 : i32, i32
  }
  func.func @transform_8(%arg0: i32, %arg1: memref<8xi32, #tpu.memory_space<smem>>) -> (i32, i32) {
    %c0_i32 = arith.constant 0 : i32
    %c0_i32_0 = arith.constant 0 : i32
    %c0_i32_1 = arith.constant 0 : i32
    return %c0_i32, %c0_i32_0 : i32, i32
  }
  func.func @transform_9(%arg0: i32, %arg1: memref<8xi32, #tpu.memory_space<smem>>) -> (i32, i32) {
    %c0_i32 = arith.constant 0 : i32
    %c0_i32_0 = arith.constant 0 : i32
    %c0_i32_1 = arith.constant 0 : i32
    return %c0_i32, %c0_i32_0 : i32, i32
  }
  func.func @transform_10(%arg0: i32, %arg1: memref<8xi32, #tpu.memory_space<smem>>) -> (i32, i32) {
    %c0_i32 = arith.constant 0 : i32
    %c0_i32_0 = arith.constant 0 : i32
    %c0_i32_1 = arith.constant 0 : i32
    return %c0_i32, %c0_i32_0 : i32, i32
  }
  func.func @transform_11(%arg0: i32, %arg1: memref<8xi32, #tpu.memory_space<smem>>) -> (i32, i32) {
    %c0_i32 = arith.constant 0 : i32
    %c0_i32_0 = arith.constant 0 : i32
    %c0_i32_1 = arith.constant 0 : i32
    return %c0_i32, %c0_i32_0 : i32, i32
  }
  func.func @transform_12(%arg0: i32, %arg1: memref<8xi32, #tpu.memory_space<smem>>) -> (i32, i32) {
    %c0_i32 = arith.constant 0 : i32
    %c0_i32_0 = arith.constant 0 : i32
    %c0_i32_1 = arith.constant 0 : i32
    return %c0_i32, %c0_i32_0 : i32, i32
  }
}

</mosaic_0001>

<llo_original>
// kernel: decoder_forward.1
$region0: #{decoder_forward.1}
  #allocation0 [shape = 'u32[]', space=smem, size = 0x4, offset = 0x4, fixed_abs, tag = 'smem constant byte address 0x4 - core index']
  #allocation1 [shape = 'u32[144,128]{1,0:T(1,128)}', space=vmem, size = 0x12000, scoped, tag = 'internal scratch']
  #allocation2 [shape = 'f32[8,32]{1,0:T(8,128)}', space=vmem, size = 0x1000, scoped, tag = 'scratch operand']
  #allocation3 [shape = 'f32[8,32]{1,0:T(8,128)}', space=vmem, size = 0x1000, scoped, tag = 'scratch operand']
  #allocation4 [shape = 's32[1]{0}', space=sflag, size = 0x4, scoped, tag = 'scoped memory for decoder_forward.1']
  #allocation5 [shape = 'u8[512]{0}', space=smem, size = 0x200, scoped, tag = 'prefetched SMEM operand 0']
  %s0 = inlined_call_operand.vmem [shape: s32[8], index: 0, kind: input, shape index: {}]
  %s1 = inlined_call_operand.vmem [shape: f32[8,32], index: 1, kind: input, shape index: {}]
  %s2 = inlined_call_operand.vmem [shape: f32[32,128], index: 2, kind: input, shape index: {}]
  %s3 = inlined_call_operand.vmem [shape: f32[32,128], index: 3, kind: input, shape index: {}]
  %s4 = inlined_call_operand.vmem [shape: f32[128,32], index: 4, kind: input, shape index: {}]
  %s5 = inlined_call_operand.vmem [shape: f32[32,128], index: 5, kind: input, shape index: {}]
  %s6 = inlined_call_operand.vmem [shape: f32[1,128], index: 6, kind: input, shape index: {}]
  %s7 = inlined_call_operand.vmem [shape: f32[32,128], index: 7, kind: input, shape index: {}]
  %s8 = inlined_call_operand.vmem [shape: f32[1,128], index: 8, kind: input, shape index: {}]
  %s9 = inlined_call_operand.vmem [shape: f32[1,32], index: 9, kind: input, shape index: {}]
  %s10 = inlined_call_operand.vmem [shape: f32[1,32], index: 10, kind: input, shape index: {}]
  %s11 = inlined_call_operand.hbm [shape: f32[8,128], index: 11, kind: output, shape index: {0}]
  %s12 = inlined_call_operand.hbm [shape: f32[1,32], index: 12, kind: output, shape index: {1}]
  %s13 = inlined_call_operand.hbm [shape: f32[1,32], index: 13, kind: output, shape index: {2}]
  %14 = xla_tuple %s11, %s12, %s13
  %s15 = sld [smem:[#allocation0]]
  $region66: #{decoder_forward.1} parent=0
    _
  %s17 = ssub.s32 1, %s15
  %s18 = scalar_select 0, %s17, %s15
  %s19 = sshll.u32 %s0, 4
  %s20 = int_to_ptr.vmem [resolvable:$true] %s19
  %22 = dma.vmem_to_smem %s20, 16, [#allocation5], [#allocation4]
  %23 = dma.done [#allocation4], 16
  %24 = sfence
  $region1: #{decoder_forward.1} parent=0
    #allocation6 [shape = 'u8[4096]{0}', space=vmem, size = 0x1000, scoped, tag = 'output window, operand 0, single buffered']
    #allocation7 [shape = 's32[1]{0}', space=sflag, size = 0x4, scoped, tag = 'scoped memory for decoder_forward.1']
    #allocation8 [shape = 'u8[512]{0}', space=vmem, size = 0x400, scoped, tag = 'output window, operand 1, single buffered']
    #allocation9 [shape = 's32[1]{0}', space=sflag, size = 0x4, scoped, tag = 'scoped memory for decoder_forward.1']
    #allocation10 [shape = 'u8[512]{0}', space=vmem, size = 0x400, scoped, tag = 'output window, operand 2, single buffered']
    %25 = vsyncpa [#allocation7], 0
    %26 = vsyncpa [#allocation9], 0
    // Predicated region
    $region2: #{decoder_forward.1} parent=1 // pred_check
      _
    $region3: #{decoder_forward.1} parent=1 // pred_check_branch
      %28 = sbr.rel (0) target = $region5
    $region4: #{decoder_forward.1} parent=1 // pred_region
      _
    $region5: #{decoder_forward.1} parent=1 // pred_fallthru
      _
    // Predicated region
    $region6: #{decoder_forward.1} parent=1 // pred_check
      _
    $region7: #{decoder_forward.1} parent=1 // pred_check_branch
      %30 = sbr.rel (0) target = $region9
    $region8: #{decoder_forward.1} parent=1 // pred_region
      _
    $region9: #{decoder_forward.1} parent=1 // pred_fallthru
      _
    // Predicated region
    $region10: #{decoder_forward.1} parent=1 // pred_check
      _
    $region11: #{decoder_forward.1} parent=1 // pred_check_branch
      %32 = sbr.rel (0) target = $region13
    $region12: #{decoder_forward.1} parent=1 // pred_region
      _
    $region13: #{decoder_forward.1} parent=1 // pred_fallthru
      _
    // Predicated region
    $region14: #{decoder_forward.1} parent=1 // pred_check
      _
    $region15: #{decoder_forward.1} parent=1 // pred_check_branch
      %34 = sbr.rel (0) target = $region17
    $region16: #{decoder_forward.1} parent=1 // pred_region
      _
    $region17: #{decoder_forward.1} parent=1 // pred_fallthru
      _
    // Predicated region
    $region18: #{decoder_forward.1} parent=1 // pred_check
      _
    $region19: #{decoder_forward.1} parent=1 // pred_check_branch
      %36 = sbr.rel (0) target = $region21
    $region20: #{decoder_forward.1} parent=1 // pred_region
      _
    $region21: #{decoder_forward.1} parent=1 // pred_fallthru
      _
    // Predicated region
    $region22: #{decoder_forward.1} parent=1 // pred_check
      _
    $region23: #{decoder_forward.1} parent=1 // pred_check_branch
      %38 = sbr.rel (0) target = $region25
    $region24: #{decoder_forward.1} parent=1 // pred_region
      _
    $region25: #{decoder_forward.1} parent=1 // pred_fallthru
      _
    // Predicated region
    $region26: #{decoder_forward.1} parent=1 // pred_check
      _
    $region27: #{decoder_forward.1} parent=1 // pred_check_branch
      %40 = sbr.rel (0) target = $region29
    $region28: #{decoder_forward.1} parent=1 // pred_region
      _
    $region29: #{decoder_forward.1} parent=1 // pred_fallthru
      _
    // Predicated region
    $region30: #{decoder_forward.1} parent=1 // pred_check
      _
    $region31: #{decoder_forward.1} parent=1 // pred_check_branch
      %42 = sbr.rel (0) target = $region33
    $region32: #{decoder_forward.1} parent=1 // pred_region
      _
    $region33: #{decoder_forward.1} parent=1 // pred_fallthru
      _
    // Predicated region
    $region34: #{decoder_forward.1} parent=1 // pred_check
      _
    $region35: #{decoder_forward.1} parent=1 // pred_check_branch
      %44 = sbr.rel (0) target = $region37
    $region36: #{decoder_forward.1} parent=1 // pred_region
      _
    $region37: #{decoder_forward.1} parent=1 // pred_fallthru
      _
    // Predicated region
    $region38: #{decoder_forward.1} parent=1 // pred_check
      _
    $region39: #{decoder_forward.1} parent=1 // pred_check_branch
      %46 = sbr.rel (0) target = $region41
    $region40: #{decoder_forward.1} parent=1 // pred_region
      _
    $region41: #{decoder_forward.1} parent=1 // pred_fallthru
      _
    %s47 = sld [smem:[#allocation5]]
    %s48 = scalar_lea.vmem %s4, %s47
    %v49 = vld [vmem:[%s48] sm:$0x1]
    %vm50 = vcmask 253952
    %51 = vst.msk [vmem:[#allocation2] sm:$0x1] %vm50, %v49
    %s52 = sld [smem:[#allocation5 + $0x1]]
    %s53 = scalar_lea.vmem %s4, %s52
    %v54 = vld [vmem:[%s53] sm:$0x1]
    %55 = vst.msk [vmem:[#allocation2 + $0x1] sm:$0x1] %vm50, %v54
    %s56 = sld [smem:[#allocation5 + $0x2]]
    %s57 = scalar_lea.vmem %s4, %s56
    %v58 = vld [vmem:[%s57] sm:$0x1]
    %59 = vst.msk [vmem:[#allocation2 + $0x2] sm:$0x1] %vm50, %v58
    %s60 = sld [smem:[#allocation5 + $0x3]]
    %s61 = scalar_lea.vmem %s4, %s60
    %v62 = vld [vmem:[%s61] sm:$0x1]
    %63 = vst.msk [vmem:[#allocation2 + $0x3] sm:$0x1] %vm50, %v62
    %s64 = sld [smem:[#allocation5 + $0x4]]
    %s65 = scalar_lea.vmem %s4, %s64
    %v66 = vld [vmem:[%s65] sm:$0x1]
    %67 = vst.msk [vmem:[#allocation2 + $0x4] sm:$0x1] %vm50, %v66
    %s68 = sld [smem:[#allocation5 + $0x5]]
    %s69 = scalar_lea.vmem %s4, %s68
    %v70 = vld [vmem:[%s69] sm:$0x1]
    %71 = vst.msk [vmem:[#allocation2 + $0x5] sm:$0x1] %vm50, %v70
    %s72 = sld [smem:[#allocation5 + $0x6]]
    %s73 = scalar_lea.vmem %s4, %s72
    %v74 = vld [vmem:[%s73] sm:$0x1]
    %75 = vst.msk [vmem:[#allocation2 + $0x6] sm:$0x1] %vm50, %v74
    %s76 = sld [smem:[#allocation5 + $0x7]]
    %s77 = scalar_lea.vmem %s4, %s76
    %v78 = vld [vmem:[%s77] sm:$0x1]
    %79 = vst.msk [vmem:[#allocation2 + $0x7] sm:$0x1] %vm50, %v78
    %v80 = vld [vmem:[%s1] sm:$0xff]
    %v81 = vld [vmem:[%s2] sm:$0xff]
    %v82 = vld [vmem:[%s2 + $0x8] sm:$0xff]
    %v83 = vld [vmem:[%s2 + $0x10] sm:$0xff]
    %v84 = vld [vmem:[%s2 + $0x18] sm:$0xff]
    %v85 = vld [vmem:[#allocation2] sm:$0xff]
    %v86 = vld [vmem:[%s3] sm:$0xff]
    %v87 = vld [vmem:[%s3 + $0x8] sm:$0xff]
    %v88 = vld [vmem:[%s3 + $0x10] sm:$0xff]
    %v89 = vld [vmem:[%s3 + $0x18] sm:$0xff]
    %vm90 = vcmask 261120
    %v92 = vsel %vm90, %v85, 0
    %94 = vmatprep.subr.mxu0 0.0
    %95 = vmatpush1.msra.mxu0 0.0
    %96 = vmatprep.subr.mxu0 0.0
    %97 = vmatpush1.msra.mxu0 0.0
    %98 = vmatprep.subr.mxu0 0.0
    %99 = vmatpush1.msra.mxu0 0.0
    %100 = vmatprep.subr.mxu0 0.0
    %101 = vmatpush1.msra.mxu0 0.0
    %102 = vmatprep.subr.mxu0 0.0
    %103 = vmatpush1.msra.mxu0 0.0
    %104 = vmatprep.subr.mxu0 0.0
    %105 = vmatpush1.msra.mxu0 0.0
    %106 = vmatprep.subr.mxu0 0.0
    %107 = vmatpush1.msra.mxu0 0.0
    %108 = vmatprep.subr.mxu0 0.0
    %109 = vmatpush1.msra.mxu0 0.0
    %110 = vmatprep.subr.mxu0 0.0
    %111 = vmatpush1.msra.mxu0 0.0
    %112 = vmatprep.subr.mxu0 0.0
    %113 = vmatpush1.msra.mxu0 0.0
    %114 = vmatprep.subr.mxu0 0.0
    %115 = vmatpush1.msra.mxu0 0.0
    %116 = vmatprep.subr.mxu0 0.0
    %117 = vmatpush1.msra.mxu0 0.0
    %118 = vmatprep.subr.mxu0 0.0
    %119 = vmatpush1.msra.mxu0 %v89
    %120 = vmatprep.subr.mxu0 0.0
    %121 = vmatpush1.msra.mxu0 %v88
    %122 = vmatprep.subr.mxu0 0.0
    %123 = vmatpush1.msra.mxu0 %v87
    %124 = vmatprep.subr.mxu0 0.0
    %125 = vmatpush1.msra.mxu0 %v86
    %126 = vmatprep.subr.mxu0 0.0
    %127 = vmatpush2.msra.mxu0 0.0
    %128 = vmatprep.subr.mxu0 0.0
    %129 = vmatpush2.msra.mxu0 0.0
    %130 = vmatprep.subr.mxu0 0.0
    %131 = vmatpush2.msra.mxu0 0.0
    %132 = vmatprep.subr.mxu0 0.0
    %133 = vmatpush2.msra.mxu0 0.0
    %134 = vmatprep.subr.mxu0 0.0
    %135 = vmatpush2.msra.mxu0 0.0
    %136 = vmatprep.subr.mxu0 0.0
    %137 = vmatpush2.msra.mxu0 0.0
    %138 = vmatprep.subr.mxu0 0.0
    %139 = vmatpush2.msra.mxu0 0.0
    %140 = vmatprep.subr.mxu0 0.0
    %141 = vmatpush2.msra.mxu0 0.0
    %142 = vmatprep.subr.mxu0 0.0
    %143 = vmatpush2.msra.mxu0 0.0
    %144 = vmatprep.subr.mxu0 0.0
    %145 = vmatpush2.msra.mxu0 0.0
    %146 = vmatprep.subr.mxu0 0.0
    %147 = vmatpush2.msra.mxu0 0.0
    %148 = vmatprep.subr.mxu0 0.0
    %149 = vmatpush2.msra.mxu0 0.0
    %150 = vmatprep.subr.mxu0 0.0
    %151 = vmatpush2.msra.mxu0 0.0
    %152 = vmatprep.subr.mxu0 0.0
    %153 = vmatpush2.msra.mxu0 0.0
    %154 = vmatprep.subr.mxu0 0.0
    %155 = vmatpush2.msra.mxu0 0.0
    %156 = vmatprep.subr.mxu0 0.0
    %157 = vmatpush2.msra.mxu0 0.0
    %158 = vmatprep.mubr.f32.mxu0 0.0
    %159 = vmatmul.mubr.f32.gmra.mxu0 %v92
    %v160 = vpop.f32.mrf.mxu0
    %v161 = vadd.f32 0.0, %v160
    %v162 = vpop.f32.mrf.mxu0
    %163 = vdwg.mxu0
    %v165 = vsel %vm90, %v80, 0
    %167 = vmatprep.subr.mxu0 0.0
    %168 = vmatpush1.msra.mxu0 0.0
    %169 = vmatprep.subr.mxu0 0.0
    %170 = vmatpush1.msra.mxu0 0.0
    %171 = vmatprep.subr.mxu0 0.0
    %172 = vmatpush1.msra.mxu0 0.0
    %173 = vmatprep.subr.mxu0 0.0
    %174 = vmatpush1.msra.mxu0 0.0
    %175 = vmatprep.subr.mxu0 0.0
    %176 = vmatpush1.msra.mxu0 0.0
    %177 = vmatprep.subr.mxu0 0.0
    %178 = vmatpush1.msra.mxu0 0.0
    %179 = vmatprep.subr.mxu0 0.0
    %180 = vmatpush1.msra.mxu0 0.0
    %181 = vmatprep.subr.mxu0 0.0
    %182 = vmatpush1.msra.mxu0 0.0
    %183 = vmatprep.subr.mxu0 0.0
    %184 = vmatpush1.msra.mxu0 0.0
    %185 = vmatprep.subr.mxu0 0.0
    %186 = vmatpush1.msra.mxu0 0.0
    %187 = vmatprep.subr.mxu0 0.0
    %188 = vmatpush1.msra.mxu0 0.0
    %189 = vmatprep.subr.mxu0 0.0
    %190 = vmatpush1.msra.mxu0 0.0
    %191 = vmatprep.subr.mxu0 0.0
    %192 = vmatpush1.msra.mxu0 %v84
    %193 = vmatprep.subr.mxu0 0.0
    %194 = vmatpush1.msra.mxu0 %v83
    %195 = vmatprep.subr.mxu0 0.0
    %196 = vmatpush1.msra.mxu0 %v82
    %197 = vmatprep.subr.mxu0 0.0
    %198 = vmatpush1.msra.mxu0 %v81
    %199 = vmatprep.subr.mxu0 0.0
    %200 = vmatpush2.msra.mxu0 0.0
    %201 = vmatprep.subr.mxu0 0.0
    %202 = vmatpush2.msra.mxu0 0.0
    %203 = vmatprep.subr.mxu0 0.0
    %204 = vmatpush2.msra.mxu0 0.0
    %205 = vmatprep.subr.mxu0 0.0
    %206 = vmatpush2.msra.mxu0 0.0
    %207 = vmatprep.subr.mxu0 0.0
    %208 = vmatpush2.msra.mxu0 0.0
    %209 = vmatprep.subr.mxu0 0.0
    %210 = vmatpush2.msra.mxu0 0.0
    %211 = vmatprep.subr.mxu0 0.0
    %212 = vmatpush2.msra.mxu0 0.0
    %213 = vmatprep.subr.mxu0 0.0
    %214 = vmatpush2.msra.mxu0 0.0
    %215 = vmatprep.subr.mxu0 0.0
    %216 = vmatpush2.msra.mxu0 0.0
    %217 = vmatprep.subr.mxu0 0.0
    %218 = vmatpush2.msra.mxu0 0.0
    %219 = vmatprep.subr.mxu0 0.0
    %220 = vmatpush2.msra.mxu0 0.0
    %221 = vmatprep.subr.mxu0 0.0
    %222 = vmatpush2.msra.mxu0 0.0
    %223 = vmatprep.subr.mxu0 0.0
    %224 = vmatpush2.msra.mxu0 0.0
    %225 = vmatprep.subr.mxu0 0.0
    %226 = vmatpush2.msra.mxu0 0.0
    %227 = vmatprep.subr.mxu0 0.0
    %228 = vmatpush2.msra.mxu0 0.0
    %229 = vmatprep.subr.mxu0 0.0
    %230 = vmatpush2.msra.mxu0 0.0
    %231 = vmatprep.mubr.f32.mxu0 0.0
    %232 = vmatmul.mubr.f32.gmra.mxu0 %v165
    %v233 = vpop.f32.mrf.mxu0
    %v234 = vadd.f32 %v161, %v233
    %v235 = vpop.f32.mrf.mxu0
    %236 = vdwg.mxu0
    %v237 = vld [vmem:[%s6] sm:$0x1]
    %v239 = vlaneseq
    %v240 = vshrl.u32 %v239, 7
    %v241 = vsub.s32 0, %v240
    %v242 = vrot.slane %v237, %v241
    %v244 = vadd.f32 %v234, %v242
    %v245 = vld [vmem:[%s9] sm:$0x1]
    %v246 = vld [vmem:[%s10] sm:$0x1]
    %v247 = vld [vmem:[%s5] sm:$0xff]
    %v248 = vld [vmem:[%s5 + $0x8] sm:$0xff]
    %v249 = vld [vmem:[%s5 + $0x10] sm:$0xff]
    %v250 = vld [vmem:[%s5 + $0x18] sm:$0xff]
    %v252 = vsel %vm90, %v245, 0
    %254 = vmatprep.subr.mxu0 0.0
    %255 = vmatpush1.msra.mxu0 0.0
    %256 = vmatprep.subr.mxu0 0.0
    %257 = vmatpush1.msra.mxu0 0.0
    %258 = vmatprep.subr.mxu0 0.0
    %259 = vmatpush1.msra.mxu0 0.0
    %260 = vmatprep.subr.mxu0 0.0
    %261 = vmatpush1.msra.mxu0 0.0
    %262 = vmatprep.subr.mxu0 0.0
    %263 = vmatpush1.msra.mxu0 0.0
    %264 = vmatprep.subr.mxu0 0.0
    %265 = vmatpush1.msra.mxu0 0.0
    %266 = vmatprep.subr.mxu0 0.0
    %267 = vmatpush1.msra.mxu0 0.0
    %268 = vmatprep.subr.mxu0 0.0
    %269 = vmatpush1.msra.mxu0 0.0
    %270 = vmatprep.subr.mxu0 0.0
    %271 = vmatpush1.msra.mxu0 0.0
    %272 = vmatprep.subr.mxu0 0.0
    %273 = vmatpush1.msra.mxu0 0.0
    %274 = vmatprep.subr.mxu0 0.0
    %275 = vmatpush1.msra.mxu0 0.0
    %276 = vmatprep.subr.mxu0 0.0
    %277 = vmatpush1.msra.mxu0 0.0
    %278 = vmatprep.subr.mxu0 0.0
    %279 = vmatpush1.msra.mxu0 %v250
    %280 = vmatprep.subr.mxu0 0.0
    %281 = vmatpush1.msra.mxu0 %v249
    %282 = vmatprep.subr.mxu0 0.0
    %283 = vmatpush1.msra.mxu0 %v248
    %284 = vmatprep.subr.mxu0 0.0
    %285 = vmatpush1.msra.mxu0 %v247
    %286 = vmatprep.subr.mxu0 0.0
    %287 = vmatpush2.msra.mxu0 0.0
    %288 = vmatprep.subr.mxu0 0.0
    %289 = vmatpush2.msra.mxu0 0.0
    %290 = vmatprep.subr.mxu0 0.0
    %291 = vmatpush2.msra.mxu0 0.0
    %292 = vmatprep.subr.mxu0 0.0
    %293 = vmatpush2.msra.mxu0 0.0
    %294 = vmatprep.subr.mxu0 0.0
    %295 = vmatpush2.msra.mxu0 0.0
    %296 = vmatprep.subr.mxu0 0.0
    %297 = vmatpush2.msra.mxu0 0.0
    %298 = vmatprep.subr.mxu0 0.0
    %299 = vmatpush2.msra.mxu0 0.0
    %300 = vmatprep.subr.mxu0 0.0
    %301 = vmatpush2.msra.mxu0 0.0
    %302 = vmatprep.subr.mxu0 0.0
    %303 = vmatpush2.msra.mxu0 0.0
    %304 = vmatprep.subr.mxu0 0.0
    %305 = vmatpush2.msra.mxu0 0.0
    %306 = vmatprep.subr.mxu0 0.0
    %307 = vmatpush2.msra.mxu0 0.0
    %308 = vmatprep.subr.mxu0 0.0
    %309 = vmatpush2.msra.mxu0 0.0
    %310 = vmatprep.subr.mxu0 0.0
    %311 = vmatpush2.msra.mxu0 0.0
    %312 = vmatprep.subr.mxu0 0.0
    %313 = vmatpush2.msra.mxu0 0.0
    %314 = vmatprep.subr.mxu0 0.0
    %315 = vmatpush2.msra.mxu0 0.0
    %316 = vmatprep.subr.mxu0 0.0
    %317 = vmatpush2.msra.mxu0 0.0
    %318 = vmatprep.mubr.f32.mxu0 0.0
    %319 = vmatmul.mubr.f32.gmra.mxu0 %v252
    %v320 = vpop.f32.mrf.mxu0
    %v321 = vadd.f32 0.0, %v320
    %v322 = vpop.f32.mrf.mxu0
    %323 = vdwg.mxu0
    %v324 = vadd.f32 %v244, %v321
    %v325 = vxor.u32 %v324, 2147483648
    %v326 = vmul.f32 %v325, 1.442695
    %v327 = vpow.pop %v326
    %v328 = vadd.f32 %v327, 1.0
    %v329 = vrcp.pop %v328
    %v330 = vmul.f32 1.0, %v329
    %v331 = vtanh.pop %v324
    %v333 = vlaneseq
    %v334 = vshrl.u32 %v333, 7
    %v335 = vsub.s32 0, %v334
    %v336 = vrot.slane %v246, %v335
    %337 = vrot.lane.b32.xlu0 %v336, 32
    %v338 = vpop.permute.xlu0 %337
    %v340 = vmul.f32 %v330, %v338
    %342 = vrot.lane.b32.xlu0 %v331, 64
    %v343 = vpop.permute.xlu0 %342
    %v345 = vmul.f32 %v330, %v343
    %347 = vrot.lane.b32.xlu0 %v345, 32
    %v348 = vpop.permute.xlu0 %347
    %v350 = vadd.f32 %v340, %v348
    %v351 = vtanh.pop %v350
    %353 = vrot.lane.b32.xlu0 %v351, 64
    %v354 = vpop.permute.xlu0 %353
    %v356 = vmul.f32 %v330, %v354
    %358 = vrot.lane.b32.xlu0 %v356, 32
    %v359 = vpop.permute.xlu0 %358
    %361 = vst.msk [vmem:[#allocation3] sm:$0x1] %vm50, %v359
    %v362 = vld [vmem:[%s5] sm:$0xff]
    %v363 = vld [vmem:[%s5 + $0x8] sm:$0xff]
    %v364 = vld [vmem:[%s5 + $0x10] sm:$0xff]
    %v365 = vld [vmem:[%s5 + $0x18] sm:$0xff]
    %v366 = vsel %vm90, %v359, 0
    %368 = vmatprep.subr.mxu0 0.0
    %369 = vmatpush1.msra.mxu0 0.0
    %370 = vmatprep.subr.mxu0 0.0
    %371 = vmatpush1.msra.mxu0 0.0
    %372 = vmatprep.subr.mxu0 0.0
    %373 = vmatpush1.msra.mxu0 0.0
    %374 = vmatprep.subr.mxu0 0.0
    %375 = vmatpush1.msra.mxu0 0.0
    %376 = vmatprep.subr.mxu0 0.0
    %377 = vmatpush1.msra.mxu0 0.0
    %378 = vmatprep.subr.mxu0 0.0
    %379 = vmatpush1.msra.mxu0 0.0
    %380 = vmatprep.subr.mxu0 0.0
    %381 = vmatpush1.msra.mxu0 0.0
    %382 = vmatprep.subr.mxu0 0.0
    %383 = vmatpush1.msra.mxu0 0.0
    %384 = vmatprep.subr.mxu0 0.0
    %385 = vmatpush1.msra.mxu0 0.0
    %386 = vmatprep.subr.mxu0 0.0
    %387 = vmatpush1.msra.mxu0 0.0
    %388 = vmatprep.subr.mxu0 0.0
    %389 = vmatpush1.msra.mxu0 0.0
    %390 = vmatprep.subr.mxu0 0.0
    %391 = vmatpush1.msra.mxu0 0.0
    %392 = vmatprep.subr.mxu0 0.0
    %393 = vmatpush1.msra.mxu0 %v365
    %394 = vmatprep.subr.mxu0 0.0
    %395 = vmatpush1.msra.mxu0 %v364
    %396 = vmatprep.subr.mxu0 0.0
    %397 = vmatpush1.msra.mxu0 %v363
    %398 = vmatprep.subr.mxu0 0.0
    %399 = vmatpush1.msra.mxu0 %v362
    %400 = vmatprep.subr.mxu0 0.0
    %401 = vmatpush2.msra.mxu0 0.0
    %402 = vmatprep.subr.mxu0 0.0
    %403 = vmatpush2.msra.mxu0 0.0
    %404 = vmatprep.subr.mxu0 0.0
    %405 = vmatpush2.msra.mxu0 0.0
    %406 = vmatprep.subr.mxu0 0.0
    %407 = vmatpush2.msra.mxu0 0.0
    %408 = vmatprep.subr.mxu0 0.0
    %409 = vmatpush2.msra.mxu0 0.0
    %410 = vmatprep.subr.mxu0 0.0
    %411 = vmatpush2.msra.mxu0 0.0
    %412 = vmatprep.subr.mxu0 0.0
    %413 = vmatpush2.msra.mxu0 0.0
    %414 = vmatprep.subr.mxu0 0.0
    %415 = vmatpush2.msra.mxu0 0.0
    %416 = vmatprep.subr.mxu0 0.0
    %417 = vmatpush2.msra.mxu0 0.0
    %418 = vmatprep.subr.mxu0 0.0
    %419 = vmatpush2.msra.mxu0 0.0
    %420 = vmatprep.subr.mxu0 0.0
    %421 = vmatpush2.msra.mxu0 0.0
    %422 = vmatprep.subr.mxu0 0.0
    %423 = vmatpush2.msra.mxu0 0.0
    %424 = vmatprep.subr.mxu0 0.0
    %425 = vmatpush2.msra.mxu0 0.0
    %426 = vmatprep.subr.mxu0 0.0
    %427 = vmatpush2.msra.mxu0 0.0
    %428 = vmatprep.subr.mxu0 0.0
    %429 = vmatpush2.msra.mxu0 0.0
    %430 = vmatprep.subr.mxu0 0.0
    %431 = vmatpush2.msra.mxu0 0.0
    %432 = vmatprep.mubr.f32.mxu0 0.0
    %433 = vmatmul.mubr.f32.gmra.mxu0 %v366
    %v434 = vpop.f32.mrf.mxu0
    %v435 = vadd.f32 0.0, %v434
    %v436 = vpop.f32.mrf.mxu0
    %437 = vdwg.mxu0
    %v439 = vrot.slane %v435, 7
    %v441 = vadd.f32 %v244, %v439
    %v442 = vxor.u32 %v441, 2147483648
    %v443 = vmul.f32 %v442, 1.442695
    %v444 = vpow.pop %v443
    %v445 = vadd.f32 %v444, 1.0
    %v446 = vrcp.pop %v445
    %v447 = vmul.f32 1.0, %v446
    %v448 = vtanh.pop %v441
    %v450 = vrot.slane %v350, 7
    %v452 = vmul.f32 %v447, %v450
    %454 = vrot.lane.b32.xlu0 %v448, 64
    %v455 = vpop.permute.xlu0 %454
    %v457 = vmul.f32 %v447, %v455
    %459 = vrot.lane.b32.xlu0 %v457, 32
    %v460 = vpop.permute.xlu0 %459
    %v462 = vadd.f32 %v452, %v460
    %v463 = vtanh.pop %v462
    %465 = vrot.lane.b32.xlu0 %v463, 64
    %v466 = vpop.permute.xlu0 %465
    %v468 = vmul.f32 %v447, %v466
    %470 = vrot.lane.b32.xlu0 %v468, 32
    %v471 = vpop.permute.xlu0 %470
    %vm473 = vcmask 254977
    %474 = vst.msk [vmem:[#allocation3] sm:$0x2] %vm473, %v471
    %v475 = vld [vmem:[%s5] sm:$0xff]
    %v476 = vld [vmem:[%s5 + $0x8] sm:$0xff]
    %v477 = vld [vmem:[%s5 + $0x10] sm:$0xff]
    %v478 = vld [vmem:[%s5 + $0x18] sm:$0xff]
    %v479 = vrot.slane %v468, 1
    %480 = vrot.lane.b32.xlu0 %v479, 32
    %v481 = vpop.permute.xlu0 %480
    %v482 = vsel %vm90, %v481, 0
    %484 = vmatprep.subr.mxu0 0.0
    %485 = vmatpush1.msra.mxu0 0.0
    %486 = vmatprep.subr.mxu0 0.0
    %487 = vmatpush1.msra.mxu0 0.0
    %488 = vmatprep.subr.mxu0 0.0
    %489 = vmatpush1.msra.mxu0 0.0
    %490 = vmatprep.subr.mxu0 0.0
    %491 = vmatpush1.msra.mxu0 0.0
    %492 = vmatprep.subr.mxu0 0.0
    %493 = vmatpush1.msra.mxu0 0.0
    %494 = vmatprep.subr.mxu0 0.0
    %495 = vmatpush1.msra.mxu0 0.0
    %496 = vmatprep.subr.mxu0 0.0
    %497 = vmatpush1.msra.mxu0 0.0
    %498 = vmatprep.subr.mxu0 0.0
    %499 = vmatpush1.msra.mxu0 0.0
    %500 = vmatprep.subr.mxu0 0.0
    %501 = vmatpush1.msra.mxu0 0.0
    %502 = vmatprep.subr.mxu0 0.0
    %503 = vmatpush1.msra.mxu0 0.0
    %504 = vmatprep.subr.mxu0 0.0
    %505 = vmatpush1.msra.mxu0 0.0
    %506 = vmatprep.subr.mxu0 0.0
    %507 = vmatpush1.msra.mxu0 0.0
    %508 = vmatprep.subr.mxu0 0.0
    %509 = vmatpush1.msra.mxu0 %v478
    %510 = vmatprep.subr.mxu0 0.0
    %511 = vmatpush1.msra.mxu0 %v477
    %512 = vmatprep.subr.mxu0 0.0
    %513 = vmatpush1.msra.mxu0 %v476
    %514 = vmatprep.subr.mxu0 0.0
    %515 = vmatpush1.msra.mxu0 %v475
    %516 = vmatprep.subr.mxu0 0.0
    %517 = vmatpush2.msra.mxu0 0.0
    %518 = vmatprep.subr.mxu0 0.0
    %519 = vmatpush2.msra.mxu0 0.0
    %520 = vmatprep.subr.mxu0 0.0
    %521 = vmatpush2.msra.mxu0 0.0
    %522 = vmatprep.subr.mxu0 0.0
    %523 = vmatpush2.msra.mxu0 0.0
    %524 = vmatprep.subr.mxu0 0.0
    %525 = vmatpush2.msra.mxu0 0.0
    %526 = vmatprep.subr.mxu0 0.0
    %527 = vmatpush2.msra.mxu0 0.0
    %528 = vmatprep.subr.mxu0 0.0
    %529 = vmatpush2.msra.mxu0 0.0
    %530 = vmatprep.subr.mxu0 0.0
    %531 = vmatpush2.msra.mxu0 0.0
    %532 = vmatprep.subr.mxu0 0.0
    %533 = vmatpush2.msra.mxu0 0.0
    %534 = vmatprep.subr.mxu0 0.0
    %535 = vmatpush2.msra.mxu0 0.0
    %536 = vmatprep.subr.mxu0 0.0
    %537 = vmatpush2.msra.mxu0 0.0
    %538 = vmatprep.subr.mxu0 0.0
    %539 = vmatpush2.msra.mxu0 0.0
    %540 = vmatprep.subr.mxu0 0.0
    %541 = vmatpush2.msra.mxu0 0.0
    %542 = vmatprep.subr.mxu0 0.0
    %543 = vmatpush2.msra.mxu0 0.0
    %544 = vmatprep.subr.mxu0 0.0
    %545 = vmatpush2.msra.mxu0 0.0
    %546 = vmatprep.subr.mxu0 0.0
    %547 = vmatpush2.msra.mxu0 0.0
    %548 = vmatprep.mubr.f32.mxu0 0.0
    %549 = vmatmul.mubr.f32.gmra.mxu0 %v482
    %v550 = vpop.f32.mrf.mxu0
    %v551 = vadd.f32 0.0, %v550
    %v552 = vpop.f32.mrf.mxu0
    %553 = vdwg.mxu0
    %v555 = vrot.slane %v551, 6
    %v557 = vadd.f32 %v244, %v555
    %v558 = vxor.u32 %v557, 2147483648
    %v559 = vmul.f32 %v558, 1.442695
    %v560 = vpow.pop %v559
    %v561 = vadd.f32 %v560, 1.0
    %v562 = vrcp.pop %v561
    %v563 = vmul.f32 1.0, %v562
    %v564 = vtanh.pop %v557
    %v566 = vrot.slane %v462, 7
    %v568 = vmul.f32 %v563, %v566
    %570 = vrot.lane.b32.xlu0 %v564, 64
    %v571 = vpop.permute.xlu0 %570
    %v573 = vmul.f32 %v563, %v571
    %575 = vrot.lane.b32.xlu0 %v573, 32
    %v576 = vpop.permute.xlu0 %575
    %v578 = vadd.f32 %v568, %v576
    %v579 = vtanh.pop %v578
    %581 = vrot.lane.b32.xlu0 %v579, 64
    %v582 = vpop.permute.xlu0 %581
    %v584 = vmul.f32 %v563, %v582
    %586 = vrot.lane.b32.xlu0 %v584, 32
    %v587 = vpop.permute.xlu0 %586
    %vm589 = vcmask 256002
    %590 = vst.msk [vmem:[#allocation3] sm:$0x4] %vm589, %v587
    %v591 = vld [vmem:[%s5] sm:$0xff]
    %v592 = vld [vmem:[%s5 + $0x8] sm:$0xff]
    %v593 = vld [vmem:[%s5 + $0x10] sm:$0xff]
    %v594 = vld [vmem:[%s5 + $0x18] sm:$0xff]
    %v595 = vrot.slane %v584, 2
    %596 = vrot.lane.b32.xlu0 %v595, 32
    %v597 = vpop.permute.xlu0 %596
    %v598 = vsel %vm90, %v597, 0
    %600 = vmatprep.subr.mxu0 0.0
    %601 = vmatpush1.msra.mxu0 0.0
    %602 = vmatprep.subr.mxu0 0.0
    %603 = vmatpush1.msra.mxu0 0.0
    %604 = vmatprep.subr.mxu0 0.0
    %605 = vmatpush1.msra.mxu0 0.0
    %606 = vmatprep.subr.mxu0 0.0
    %607 = vmatpush1.msra.mxu0 0.0
    %608 = vmatprep.subr.mxu0 0.0
    %609 = vmatpush1.msra.mxu0 0.0
    %610 = vmatprep.subr.mxu0 0.0
    %611 = vmatpush1.msra.mxu0 0.0
    %612 = vmatprep.subr.mxu0 0.0
    %613 = vmatpush1.msra.mxu0 0.0
    %614 = vmatprep.subr.mxu0 0.0
    %615 = vmatpush1.msra.mxu0 0.0
    %616 = vmatprep.subr.mxu0 0.0
    %617 = vmatpush1.msra.mxu0 0.0
    %618 = vmatprep.subr.mxu0 0.0
    %619 = vmatpush1.msra.mxu0 0.0
    %620 = vmatprep.subr.mxu0 0.0
    %621 = vmatpush1.msra.mxu0 0.0
    %622 = vmatprep.subr.mxu0 0.0
    %623 = vmatpush1.msra.mxu0 0.0
    %624 = vmatprep.subr.mxu0 0.0
    %625 = vmatpush1.msra.mxu0 %v594
    %626 = vmatprep.subr.mxu0 0.0
    %627 = vmatpush1.msra.mxu0 %v593
    %628 = vmatprep.subr.mxu0 0.0
    %629 = vmatpush1.msra.mxu0 %v592
    %630 = vmatprep.subr.mxu0 0.0
    %631 = vmatpush1.msra.mxu0 %v591
    %632 = vmatprep.subr.mxu0 0.0
    %633 = vmatpush2.msra.mxu0 0.0
    %634 = vmatprep.subr.mxu0 0.0
    %635 = vmatpush2.msra.mxu0 0.0
    %636 = vmatprep.subr.mxu0 0.0
    %637 = vmatpush2.msra.mxu0 0.0
    %638 = vmatprep.subr.mxu0 0.0
    %639 = vmatpush2.msra.mxu0 0.0
    %640 = vmatprep.subr.mxu0 0.0
    %641 = vmatpush2.msra.mxu0 0.0
    %642 = vmatprep.subr.mxu0 0.0
    %643 = vmatpush2.msra.mxu0 0.0
    %644 = vmatprep.subr.mxu0 0.0
    %645 = vmatpush2.msra.mxu0 0.0
    %646 = vmatprep.subr.mxu0 0.0
    %647 = vmatpush2.msra.mxu0 0.0
    %648 = vmatprep.subr.mxu0 0.0
    %649 = vmatpush2.msra.mxu0 0.0
    %650 = vmatprep.subr.mxu0 0.0
    %651 = vmatpush2.msra.mxu0 0.0
    %652 = vmatprep.subr.mxu0 0.0
    %653 = vmatpush2.msra.mxu0 0.0
    %654 = vmatprep.subr.mxu0 0.0
    %655 = vmatpush2.msra.mxu0 0.0
    %656 = vmatprep.subr.mxu0 0.0
    %657 = vmatpush2.msra.mxu0 0.0
    %658 = vmatprep.subr.mxu0 0.0
    %659 = vmatpush2.msra.mxu0 0.0
    %660 = vmatprep.subr.mxu0 0.0
    %661 = vmatpush2.msra.mxu0 0.0
    %662 = vmatprep.subr.mxu0 0.0
    %663 = vmatpush2.msra.mxu0 0.0
    %664 = vmatprep.mubr.f32.mxu0 0.0
    %665 = vmatmul.mubr.f32.gmra.mxu0 %v598
    %v666 = vpop.f32.mrf.mxu0
    %v667 = vadd.f32 0.0, %v666
    %v668 = vpop.f32.mrf.mxu0
    %669 = vdwg.mxu0
    %v671 = vrot.slane %v667, 5
    %v673 = vadd.f32 %v244, %v671
    %v674 = vxor.u32 %v673, 2147483648
    %v675 = vmul.f32 %v674, 1.442695
    %v676 = vpow.pop %v675
    %v677 = vadd.f32 %v676, 1.0
    %v678 = vrcp.pop %v677
    %v679 = vmul.f32 1.0, %v678
    %v680 = vtanh.pop %v673
    %v682 = vrot.slane %v578, 7
    %v684 = vmul.f32 %v679, %v682
    %686 = vrot.lane.b32.xlu0 %v680, 64
    %v687 = vpop.permute.xlu0 %686
    %v689 = vmul.f32 %v679, %v687
    %691 = vrot.lane.b32.xlu0 %v689, 32
    %v692 = vpop.permute.xlu0 %691
    %v694 = vadd.f32 %v684, %v692
    %v695 = vtanh.pop %v694
    %697 = vrot.lane.b32.xlu0 %v695, 64
    %v698 = vpop.permute.xlu0 %697
    %v700 = vmul.f32 %v679, %v698
    %702 = vrot.lane.b32.xlu0 %v700, 32
    %v703 = vpop.permute.xlu0 %702
    %vm705 = vcmask 257027
    %706 = vst.msk [vmem:[#allocation3] sm:$0x8] %vm705, %v703
    %v707 = vld [vmem:[%s5] sm:$0xff]
    %v708 = vld [vmem:[%s5 + $0x8] sm:$0xff]
    %v709 = vld [vmem:[%s5 + $0x10] sm:$0xff]
    %v710 = vld [vmem:[%s5 + $0x18] sm:$0xff]
    %v711 = vrot.slane %v700, 3
    %712 = vrot.lane.b32.xlu0 %v711, 32
    %v713 = vpop.permute.xlu0 %712
    %v714 = vsel %vm90, %v713, 0
    %716 = vmatprep.subr.mxu0 0.0
    %717 = vmatpush1.msra.mxu0 0.0
    %718 = vmatprep.subr.mxu0 0.0
    %719 = vmatpush1.msra.mxu0 0.0
    %720 = vmatprep.subr.mxu0 0.0
    %721 = vmatpush1.msra.mxu0 0.0
    %722 = vmatprep.subr.mxu0 0.0
    %723 = vmatpush1.msra.mxu0 0.0
    %724 = vmatprep.subr.mxu0 0.0
    %725 = vmatpush1.msra.mxu0 0.0
    %726 = vmatprep.subr.mxu0 0.0
    %727 = vmatpush1.msra.mxu0 0.0
    %728 = vmatprep.subr.mxu0 0.0
    %729 = vmatpush1.msra.mxu0 0.0
    %730 = vmatprep.subr.mxu0 0.0
    %731 = vmatpush1.msra.mxu0 0.0
    %732 = vmatprep.subr.mxu0 0.0
    %733 = vmatpush1.msra.mxu0 0.0
    %734 = vmatprep.subr.mxu0 0.0
    %735 = vmatpush1.msra.mxu0 0.0
    %736 = vmatprep.subr.mxu0 0.0
    %737 = vmatpush1.msra.mxu0 0.0
    %738 = vmatprep.subr.mxu0 0.0
    %739 = vmatpush1.msra.mxu0 0.0
    %740 = vmatprep.subr.mxu0 0.0
    %741 = vmatpush1.msra.mxu0 %v710
    %742 = vmatprep.subr.mxu0 0.0
    %743 = vmatpush1.msra.mxu0 %v709
    %744 = vmatprep.subr.mxu0 0.0
    %745 = vmatpush1.msra.mxu0 %v708
    %746 = vmatprep.subr.mxu0 0.0
    %747 = vmatpush1.msra.mxu0 %v707
    %748 = vmatprep.subr.mxu0 0.0
    %749 = vmatpush2.msra.mxu0 0.0
    %750 = vmatprep.subr.mxu0 0.0
    %751 = vmatpush2.msra.mxu0 0.0
    %752 = vmatprep.subr.mxu0 0.0
    %753 = vmatpush2.msra.mxu0 0.0
    %754 = vmatprep.subr.mxu0 0.0
    %755 = vmatpush2.msra.mxu0 0.0
    %756 = vmatprep.subr.mxu0 0.0
    %757 = vmatpush2.msra.mxu0 0.0
    %758 = vmatprep.subr.mxu0 0.0
    %759 = vmatpush2.msra.mxu0 0.0
    %760 = vmatprep.subr.mxu0 0.0
    %761 = vmatpush2.msra.mxu0 0.0
    %762 = vmatprep.subr.mxu0 0.0
    %763 = vmatpush2.msra.mxu0 0.0
    %764 = vmatprep.subr.mxu0 0.0
    %765 = vmatpush2.msra.mxu0 0.0
    %766 = vmatprep.subr.mxu0 0.0
    %767 = vmatpush2.msra.mxu0 0.0
    %768 = vmatprep.subr.mxu0 0.0
    %769 = vmatpush2.msra.mxu0 0.0
    %770 = vmatprep.subr.mxu0 0.0
    %771 = vmatpush2.msra.mxu0 0.0
    %772 = vmatprep.subr.mxu0 0.0
    %773 = vmatpush2.msra.mxu0 0.0
    %774 = vmatprep.subr.mxu0 0.0
    %775 = vmatpush2.msra.mxu0 0.0
    %776 = vmatprep.subr.mxu0 0.0
    %777 = vmatpush2.msra.mxu0 0.0
    %778 = vmatprep.subr.mxu0 0.0
    %779 = vmatpush2.msra.mxu0 0.0
    %780 = vmatprep.mubr.f32.mxu0 0.0
    %781 = vmatmul.mubr.f32.gmra.mxu0 %v714
    %v782 = vpop.f32.mrf.mxu0
    %v783 = vadd.f32 0.0, %v782
    %v784 = vpop.f32.mrf.mxu0
    %785 = vdwg.mxu0
    %v787 = vrot.slane %v783, 4
    %v789 = vadd.f32 %v244, %v787
    %v790 = vxor.u32 %v789, 2147483648
    %v791 = vmul.f32 %v790, 1.442695
    %v792 = vpow.pop %v791
    %v793 = vadd.f32 %v792, 1.0
    %v794 = vrcp.pop %v793
    %v795 = vmul.f32 1.0, %v794
    %v796 = vtanh.pop %v789
    %v798 = vrot.slane %v694, 7
    %v800 = vmul.f32 %v795, %v798
    %802 = vrot.lane.b32.xlu0 %v796, 64
    %v803 = vpop.permute.xlu0 %802
    %v805 = vmul.f32 %v795, %v803
    %807 = vrot.lane.b32.xlu0 %v805, 32
    %v808 = vpop.permute.xlu0 %807
    %v810 = vadd.f32 %v800, %v808
    %v811 = vtanh.pop %v810
    %813 = vrot.lane.b32.xlu0 %v811, 64
    %v814 = vpop.permute.xlu0 %813
    %v816 = vmul.f32 %v795, %v814
    %818 = vrot.lane.b32.xlu0 %v816, 32
    %v819 = vpop.permute.xlu0 %818
    %vm821 = vcmask 258052
    %822 = vst.msk [vmem:[#allocation3] sm:$0x10] %vm821, %v819
    %v823 = vld [vmem:[%s5] sm:$0xff]
    %v824 = vld [vmem:[%s5 + $0x8] sm:$0xff]
    %v825 = vld [vmem:[%s5 + $0x10] sm:$0xff]
    %v826 = vld [vmem:[%s5 + $0x18] sm:$0xff]
    %v827 = vrot.slane %v816, 4
    %828 = vrot.lane.b32.xlu0 %v827, 32
    %v829 = vpop.permute.xlu0 %828
    %v830 = vsel %vm90, %v829, 0
    %832 = vmatprep.subr.mxu0 0.0
    %833 = vmatpush1.msra.mxu0 0.0
    %834 = vmatprep.subr.mxu0 0.0
    %835 = vmatpush1.msra.mxu0 0.0
    %836 = vmatprep.subr.mxu0 0.0
    %837 = vmatpush1.msra.mxu0 0.0
    %838 = vmatprep.subr.mxu0 0.0
    %839 = vmatpush1.msra.mxu0 0.0
    %840 = vmatprep.subr.mxu0 0.0
    %841 = vmatpush1.msra.mxu0 0.0
    %842 = vmatprep.subr.mxu0 0.0
    %843 = vmatpush1.msra.mxu0 0.0
    %844 = vmatprep.subr.mxu0 0.0
    %845 = vmatpush1.msra.mxu0 0.0
    %846 = vmatprep.subr.mxu0 0.0
    %847 = vmatpush1.msra.mxu0 0.0
    %848 = vmatprep.subr.mxu0 0.0
    %849 = vmatpush1.msra.mxu0 0.0
    %850 = vmatprep.subr.mxu0 0.0
    %851 = vmatpush1.msra.mxu0 0.0
    %852 = vmatprep.subr.mxu0 0.0
    %853 = vmatpush1.msra.mxu0 0.0
    %854 = vmatprep.subr.mxu0 0.0
    %855 = vmatpush1.msra.mxu0 0.0
    %856 = vmatprep.subr.mxu0 0.0
    %857 = vmatpush1.msra.mxu0 %v826
    %858 = vmatprep.subr.mxu0 0.0
    %859 = vmatpush1.msra.mxu0 %v825
    %860 = vmatprep.subr.mxu0 0.0
    %861 = vmatpush1.msra.mxu0 %v824
    %862 = vmatprep.subr.mxu0 0.0
    %863 = vmatpush1.msra.mxu0 %v823
    %864 = vmatprep.subr.mxu0 0.0
    %865 = vmatpush2.msra.mxu0 0.0
    %866 = vmatprep.subr.mxu0 0.0
    %867 = vmatpush2.msra.mxu0 0.0
    %868 = vmatprep.subr.mxu0 0.0
    %869 = vmatpush2.msra.mxu0 0.0
    %870 = vmatprep.subr.mxu0 0.0
    %871 = vmatpush2.msra.mxu0 0.0
    %872 = vmatprep.subr.mxu0 0.0
    %873 = vmatpush2.msra.mxu0 0.0
    %874 = vmatprep.subr.mxu0 0.0
    %875 = vmatpush2.msra.mxu0 0.0
    %876 = vmatprep.subr.mxu0 0.0
    %877 = vmatpush2.msra.mxu0 0.0
    %878 = vmatprep.subr.mxu0 0.0
    %879 = vmatpush2.msra.mxu0 0.0
    %880 = vmatprep.subr.mxu0 0.0
    %881 = vmatpush2.msra.mxu0 0.0
    %882 = vmatprep.subr.mxu0 0.0
    %883 = vmatpush2.msra.mxu0 0.0
    %884 = vmatprep.subr.mxu0 0.0
    %885 = vmatpush2.msra.mxu0 0.0
    %886 = vmatprep.subr.mxu0 0.0
    %887 = vmatpush2.msra.mxu0 0.0
    %888 = vmatprep.subr.mxu0 0.0
    %889 = vmatpush2.msra.mxu0 0.0
    %890 = vmatprep.subr.mxu0 0.0
    %891 = vmatpush2.msra.mxu0 0.0
    %892 = vmatprep.subr.mxu0 0.0
    %893 = vmatpush2.msra.mxu0 0.0
    %894 = vmatprep.subr.mxu0 0.0
    %895 = vmatpush2.msra.mxu0 0.0
    %896 = vmatprep.mubr.f32.mxu0 0.0
    %897 = vmatmul.mubr.f32.gmra.mxu0 %v830
    %v898 = vpop.f32.mrf.mxu0
    %v899 = vadd.f32 0.0, %v898
    %v900 = vpop.f32.mrf.mxu0
    %901 = vdwg.mxu0
    %v903 = vrot.slane %v899, 3
    %v905 = vadd.f32 %v244, %v903
    %v906 = vxor.u32 %v905, 2147483648
    %v907 = vmul.f32 %v906, 1.442695
    %v908 = vpow.pop %v907
    %v909 = vadd.f32 %v908, 1.0
    %v910 = vrcp.pop %v909
    %v911 = vmul.f32 1.0, %v910
    %v912 = vtanh.pop %v905
    %v914 = vrot.slane %v810, 7
    %v916 = vmul.f32 %v911, %v914
    %918 = vrot.lane.b32.xlu0 %v912, 64
    %v919 = vpop.permute.xlu0 %918
    %v921 = vmul.f32 %v911, %v919
    %923 = vrot.lane.b32.xlu0 %v921, 32
    %v924 = vpop.permute.xlu0 %923
    %v926 = vadd.f32 %v916, %v924
    %v927 = vtanh.pop %v926
    %929 = vrot.lane.b32.xlu0 %v927, 64
    %v930 = vpop.permute.xlu0 %929
    %v932 = vmul.f32 %v911, %v930
    %934 = vrot.lane.b32.xlu0 %v932, 32
    %v935 = vpop.permute.xlu0 %934
    %vm937 = vcmask 259077
    %938 = vst.msk [vmem:[#allocation3] sm:$0x20] %vm937, %v935
    %v939 = vld [vmem:[%s5] sm:$0xff]
    %v940 = vld [vmem:[%s5 + $0x8] sm:$0xff]
    %v941 = vld [vmem:[%s5 + $0x10] sm:$0xff]
    %v942 = vld [vmem:[%s5 + $0x18] sm:$0xff]
    %v943 = vrot.slane %v932, 5
    %944 = vrot.lane.b32.xlu0 %v943, 32
    %v945 = vpop.permute.xlu0 %944
    %v946 = vsel %vm90, %v945, 0
    %948 = vmatprep.subr.mxu0 0.0
    %949 = vmatpush1.msra.mxu0 0.0
    %950 = vmatprep.subr.mxu0 0.0
    %951 = vmatpush1.msra.mxu0 0.0
    %952 = vmatprep.subr.mxu0 0.0
    %953 = vmatpush1.msra.mxu0 0.0
    %954 = vmatprep.subr.mxu0 0.0
    %955 = vmatpush1.msra.mxu0 0.0
    %956 = vmatprep.subr.mxu0 0.0
    %957 = vmatpush1.msra.mxu0 0.0
    %958 = vmatprep.subr.mxu0 0.0
    %959 = vmatpush1.msra.mxu0 0.0
    %960 = vmatprep.subr.mxu0 0.0
    %961 = vmatpush1.msra.mxu0 0.0
    %962 = vmatprep.subr.mxu0 0.0
    %963 = vmatpush1.msra.mxu0 0.0
    %964 = vmatprep.subr.mxu0 0.0
    %965 = vmatpush1.msra.mxu0 0.0
    %966 = vmatprep.subr.mxu0 0.0
    %967 = vmatpush1.msra.mxu0 0.0
    %968 = vmatprep.subr.mxu0 0.0
    %969 = vmatpush1.msra.mxu0 0.0
    %970 = vmatprep.subr.mxu0 0.0
    %971 = vmatpush1.msra.mxu0 0.0
    %972 = vmatprep.subr.mxu0 0.0
    %973 = vmatpush1.msra.mxu0 %v942
    %974 = vmatprep.subr.mxu0 0.0
    %975 = vmatpush1.msra.mxu0 %v941
    %976 = vmatprep.subr.mxu0 0.0
    %977 = vmatpush1.msra.mxu0 %v940
    %978 = vmatprep.subr.mxu0 0.0
    %979 = vmatpush1.msra.mxu0 %v939
    %980 = vmatprep.subr.mxu0 0.0
    %981 = vmatpush2.msra.mxu0 0.0
    %982 = vmatprep.subr.mxu0 0.0
    %983 = vmatpush2.msra.mxu0 0.0
    %984 = vmatprep.subr.mxu0 0.0
    %985 = vmatpush2.msra.mxu0 0.0
    %986 = vmatprep.subr.mxu0 0.0
    %987 = vmatpush2.msra.mxu0 0.0
    %988 = vmatprep.subr.mxu0 0.0
    %989 = vmatpush2.msra.mxu0 0.0
    %990 = vmatprep.subr.mxu0 0.0
    %991 = vmatpush2.msra.mxu0 0.0
    %992 = vmatprep.subr.mxu0 0.0
    %993 = vmatpush2.msra.mxu0 0.0
    %994 = vmatprep.subr.mxu0 0.0
    %995 = vmatpush2.msra.mxu0 0.0
    %996 = vmatprep.subr.mxu0 0.0
    %997 = vmatpush2.msra.mxu0 0.0
    %998 = vmatprep.subr.mxu0 0.0
    %999 = vmatpush2.msra.mxu0 0.0
    %1000 = vmatprep.subr.mxu0 0.0
    %1001 = vmatpush2.msra.mxu0 0.0
    %1002 = vmatprep.subr.mxu0 0.0
    %1003 = vmatpush2.msra.mxu0 0.0
    %1004 = vmatprep.subr.mxu0 0.0
    %1005 = vmatpush2.msra.mxu0 0.0
    %1006 = vmatprep.subr.mxu0 0.0
    %1007 = vmatpush2.msra.mxu0 0.0
    %1008 = vmatprep.subr.mxu0 0.0
    %1009 = vmatpush2.msra.mxu0 0.0
    %1010 = vmatprep.subr.mxu0 0.0
    %1011 = vmatpush2.msra.mxu0 0.0
    %1012 = vmatprep.mubr.f32.mxu0 0.0
    %1013 = vmatmul.mubr.f32.gmra.mxu0 %v946
    %v1014 = vpop.f32.mrf.mxu0
    %v1015 = vadd.f32 0.0, %v1014
    %v1016 = vpop.f32.mrf.mxu0
    %1017 = vdwg.mxu0
    %v1019 = vrot.slane %v1015, 2
    %v1021 = vadd.f32 %v244, %v1019
    %v1022 = vxor.u32 %v1021, 2147483648
    %v1023 = vmul.f32 %v1022, 1.442695
    %v1024 = vpow.pop %v1023
    %v1025 = vadd.f32 %v1024, 1.0
    %v1026 = vrcp.pop %v1025
    %v1027 = vmul.f32 1.0, %v1026
    %v1028 = vtanh.pop %v1021
    %v1030 = vrot.slane %v926, 7
    %v1032 = vmul.f32 %v1027, %v1030
    %1034 = vrot.lane.b32.xlu0 %v1028, 64
    %v1035 = vpop.permute.xlu0 %1034
    %v1037 = vmul.f32 %v1027, %v1035
    %1039 = vrot.lane.b32.xlu0 %v1037, 32
    %v1040 = vpop.permute.xlu0 %1039
    %v1042 = vadd.f32 %v1032, %v1040
    %v1043 = vtanh.pop %v1042
    %1045 = vrot.lane.b32.xlu0 %v1043, 64
    %v1046 = vpop.permute.xlu0 %1045
    %v1048 = vmul.f32 %v1027, %v1046
    %1050 = vrot.lane.b32.xlu0 %v1048, 32
    %v1051 = vpop.permute.xlu0 %1050
    %vm1053 = vcmask 260102
    %1054 = vst.msk [vmem:[#allocation3] sm:$0x40] %vm1053, %v1051
    %v1055 = vld [vmem:[%s5] sm:$0xff]
    %v1056 = vld [vmem:[%s5 + $0x8] sm:$0xff]
    %v1057 = vld [vmem:[%s5 + $0x10] sm:$0xff]
    %v1058 = vld [vmem:[%s5 + $0x18] sm:$0xff]
    %v1059 = vrot.slane %v1048, 6
    %1060 = vrot.lane.b32.xlu0 %v1059, 32
    %v1061 = vpop.permute.xlu0 %1060
    %v1062 = vsel %vm90, %v1061, 0
    %1064 = vmatprep.subr.mxu0 0.0
    %1065 = vmatpush1.msra.mxu0 0.0
    %1066 = vmatprep.subr.mxu0 0.0
    %1067 = vmatpush1.msra.mxu0 0.0
    %1068 = vmatprep.subr.mxu0 0.0
    %1069 = vmatpush1.msra.mxu0 0.0
    %1070 = vmatprep.subr.mxu0 0.0
    %1071 = vmatpush1.msra.mxu0 0.0
    %1072 = vmatprep.subr.mxu0 0.0
    %1073 = vmatpush1.msra.mxu0 0.0
    %1074 = vmatprep.subr.mxu0 0.0
    %1075 = vmatpush1.msra.mxu0 0.0
    %1076 = vmatprep.subr.mxu0 0.0
    %1077 = vmatpush1.msra.mxu0 0.0
    %1078 = vmatprep.subr.mxu0 0.0
    %1079 = vmatpush1.msra.mxu0 0.0
    %1080 = vmatprep.subr.mxu0 0.0
    %1081 = vmatpush1.msra.mxu0 0.0
    %1082 = vmatprep.subr.mxu0 0.0
    %1083 = vmatpush1.msra.mxu0 0.0
    %1084 = vmatprep.subr.mxu0 0.0
    %1085 = vmatpush1.msra.mxu0 0.0
    %1086 = vmatprep.subr.mxu0 0.0
    %1087 = vmatpush1.msra.mxu0 0.0
    %1088 = vmatprep.subr.mxu0 0.0
    %1089 = vmatpush1.msra.mxu0 %v1058
    %1090 = vmatprep.subr.mxu0 0.0
    %1091 = vmatpush1.msra.mxu0 %v1057
    %1092 = vmatprep.subr.mxu0 0.0
    %1093 = vmatpush1.msra.mxu0 %v1056
    %1094 = vmatprep.subr.mxu0 0.0
    %1095 = vmatpush1.msra.mxu0 %v1055
    %1096 = vmatprep.subr.mxu0 0.0
    %1097 = vmatpush2.msra.mxu0 0.0
    %1098 = vmatprep.subr.mxu0 0.0
    %1099 = vmatpush2.msra.mxu0 0.0
    %1100 = vmatprep.subr.mxu0 0.0
    %1101 = vmatpush2.msra.mxu0 0.0
    %1102 = vmatprep.subr.mxu0 0.0
    %1103 = vmatpush2.msra.mxu0 0.0
    %1104 = vmatprep.subr.mxu0 0.0
    %1105 = vmatpush2.msra.mxu0 0.0
    %1106 = vmatprep.subr.mxu0 0.0
    %1107 = vmatpush2.msra.mxu0 0.0
    %1108 = vmatprep.subr.mxu0 0.0
    %1109 = vmatpush2.msra.mxu0 0.0
    %1110 = vmatprep.subr.mxu0 0.0
    %1111 = vmatpush2.msra.mxu0 0.0
    %1112 = vmatprep.subr.mxu0 0.0
    %1113 = vmatpush2.msra.mxu0 0.0
    %1114 = vmatprep.subr.mxu0 0.0
    %1115 = vmatpush2.msra.mxu0 0.0
    %1116 = vmatprep.subr.mxu0 0.0
    %1117 = vmatpush2.msra.mxu0 0.0
    %1118 = vmatprep.subr.mxu0 0.0
    %1119 = vmatpush2.msra.mxu0 0.0
    %1120 = vmatprep.subr.mxu0 0.0
    %1121 = vmatpush2.msra.mxu0 0.0
    %1122 = vmatprep.subr.mxu0 0.0
    %1123 = vmatpush2.msra.mxu0 0.0
    %1124 = vmatprep.subr.mxu0 0.0
    %1125 = vmatpush2.msra.mxu0 0.0
    %1126 = vmatprep.subr.mxu0 0.0
    %1127 = vmatpush2.msra.mxu0 0.0
    %1128 = vmatprep.mubr.f32.mxu0 0.0
    %1129 = vmatmul.mubr.f32.gmra.mxu0 %v1062
    %v1130 = vpop.f32.mrf.mxu0
    %v1131 = vadd.f32 0.0, %v1130
    %v1132 = vpop.f32.mrf.mxu0
    %1133 = vdwg.mxu0
    %v1135 = vrot.slane %v1131, 1
    %v1137 = vadd.f32 %v244, %v1135
    %v1138 = vxor.u32 %v1137, 2147483648
    %v1139 = vmul.f32 %v1138, 1.442695
    %v1140 = vpow.pop %v1139
    %v1141 = vadd.f32 %v1140, 1.0
    %v1142 = vrcp.pop %v1141
    %v1143 = vmul.f32 1.0, %v1142
    %v1144 = vtanh.pop %v1137
    %v1146 = vrot.slane %v1042, 7
    %v1148 = vmul.f32 %v1143, %v1146
    %1150 = vrot.lane.b32.xlu0 %v1144, 64
    %v1151 = vpop.permute.xlu0 %1150
    %v1153 = vmul.f32 %v1143, %v1151
    %1155 = vrot.lane.b32.xlu0 %v1153, 32
    %v1156 = vpop.permute.xlu0 %1155
    %v1158 = vadd.f32 %v1148, %v1156
    %v1159 = vtanh.pop %v1158
    %1161 = vrot.lane.b32.xlu0 %v1159, 64
    %v1162 = vpop.permute.xlu0 %1161
    %v1164 = vmul.f32 %v1143, %v1162
    %1166 = vrot.lane.b32.xlu0 %v1164, 32
    %v1167 = vpop.permute.xlu0 %1166
    %vm1169 = vcmask 261127
    %1170 = vst.msk [vmem:[#allocation3] sm:$0x80] %vm1169, %v1167
    %v1171 = vld [vmem:[#allocation3] sm:$0xff]
    %v1172 = vld [vmem:[%s7] sm:$0xff]
    %v1173 = vld [vmem:[%s7 + $0x8] sm:$0xff]
    %v1174 = vld [vmem:[%s7 + $0x10] sm:$0xff]
    %v1175 = vld [vmem:[%s7 + $0x18] sm:$0xff]
    %v1176 = vld [vmem:[%s8] sm:$0x1]
    %v1178 = vlaneseq
    %v1179 = vshrl.u32 %v1178, 7
    %v1180 = vsub.s32 0, %v1179
    %v1181 = vrot.slane %v1176, %v1180
    %v1184 = vsel %vm90, %v1171, 0
    %1186 = vmatprep.subr.mxu0 0.0
    %1187 = vmatpush1.msra.mxu0 0.0
    %1188 = vmatprep.subr.mxu0 0.0
    %1189 = vmatpush1.msra.mxu0 0.0
    %1190 = vmatprep.subr.mxu0 0.0
    %1191 = vmatpush1.msra.mxu0 0.0
    %1192 = vmatprep.subr.mxu0 0.0
    %1193 = vmatpush1.msra.mxu0 0.0
    %1194 = vmatprep.subr.mxu0 0.0
    %1195 = vmatpush1.msra.mxu0 0.0
    %1196 = vmatprep.subr.mxu0 0.0
    %1197 = vmatpush1.msra.mxu0 0.0
    %1198 = vmatprep.subr.mxu0 0.0
    %1199 = vmatpush1.msra.mxu0 0.0
    %1200 = vmatprep.subr.mxu0 0.0
    %1201 = vmatpush1.msra.mxu0 0.0
    %1202 = vmatprep.subr.mxu0 0.0
    %1203 = vmatpush1.msra.mxu0 0.0
    %1204 = vmatprep.subr.mxu0 0.0
    %1205 = vmatpush1.msra.mxu0 0.0
    %1206 = vmatprep.subr.mxu0 0.0
    %1207 = vmatpush1.msra.mxu0 0.0
    %1208 = vmatprep.subr.mxu0 0.0
    %1209 = vmatpush1.msra.mxu0 0.0
    %1210 = vmatprep.subr.mxu0 0.0
    %1211 = vmatpush1.msra.mxu0 %v1175
    %1212 = vmatprep.subr.mxu0 0.0
    %1213 = vmatpush1.msra.mxu0 %v1174
    %1214 = vmatprep.subr.mxu0 0.0
    %1215 = vmatpush1.msra.mxu0 %v1173
    %1216 = vmatprep.subr.mxu0 0.0
    %1217 = vmatpush1.msra.mxu0 %v1172
    %1218 = vmatprep.subr.mxu0 0.0
    %1219 = vmatpush2.msra.mxu0 0.0
    %1220 = vmatprep.subr.mxu0 0.0
    %1221 = vmatpush2.msra.mxu0 0.0
    %1222 = vmatprep.subr.mxu0 0.0
    %1223 = vmatpush2.msra.mxu0 0.0
    %1224 = vmatprep.subr.mxu0 0.0
    %1225 = vmatpush2.msra.mxu0 0.0
    %1226 = vmatprep.subr.mxu0 0.0
    %1227 = vmatpush2.msra.mxu0 0.0
    %1228 = vmatprep.subr.mxu0 0.0
    %1229 = vmatpush2.msra.mxu0 0.0
    %1230 = vmatprep.subr.mxu0 0.0
    %1231 = vmatpush2.msra.mxu0 0.0
    %1232 = vmatprep.subr.mxu0 0.0
    %1233 = vmatpush2.msra.mxu0 0.0
    %1234 = vmatprep.subr.mxu0 0.0
    %1235 = vmatpush2.msra.mxu0 0.0
    %1236 = vmatprep.subr.mxu0 0.0
    %1237 = vmatpush2.msra.mxu0 0.0
    %1238 = vmatprep.subr.mxu0 0.0
    %1239 = vmatpush2.msra.mxu0 0.0
    %1240 = vmatprep.subr.mxu0 0.0
    %1241 = vmatpush2.msra.mxu0 0.0
    %1242 = vmatprep.subr.mxu0 0.0
    %1243 = vmatpush2.msra.mxu0 0.0
    %1244 = vmatprep.subr.mxu0 0.0
    %1245 = vmatpush2.msra.mxu0 0.0
    %1246 = vmatprep.subr.mxu0 0.0
    %1247 = vmatpush2.msra.mxu0 0.0
    %1248 = vmatprep.subr.mxu0 0.0
    %1249 = vmatpush2.msra.mxu0 0.0
    %1250 = vmatprep.mubr.f32.mxu0 0.0
    %1251 = vmatmul.mubr.f32.gmra.mxu0 %v1184
    %v1252 = vpop.f32.mrf.mxu0
    %v1253 = vadd.f32 %v1181, %v1252
    %v1254 = vpop.f32.mrf.mxu0
    %1255 = vdwg.mxu0
    %1256 = vst [vmem:[#allocation6] sm:$0xff] %v1253
    %1257 = vst.msk [vmem:[#allocation8 - $0x7] sm:$0x80] %vm1169, %v1167
    %1259 = vrot.lane.b32.xlu0 %v1158, 96
    %v1260 = vpop.permute.xlu0 %1259
    %1262 = vst.msk [vmem:[#allocation10 - $0x7] sm:$0x80] %vm1169, %v1260
    // Predicated region
    $region42: #{decoder_forward.1} parent=1 // pred_check
      _
    $region43: #{decoder_forward.1} parent=1 // pred_check_branch
      %1264 = sbr.rel (0) target = $region45
    $region44: #{decoder_forward.1} parent=1 // pred_region
      %s1266 = ssub.s32 128, 128
      %1267 = vsyncadd [#allocation7], %s1266
      %s1269 = sshll.u32 [#allocation6], 4
      %s1270 = int_to_ptr.vmem [resolvable:$true] %s1269
      %1272 = dma.vmem_to_hbm [thread:$0]  %s1270, 128, %s11, [#allocation7]
    $region45: #{decoder_forward.1} parent=1 // pred_fallthru
      _
    // Predicated region
    $region46: #{decoder_forward.1} parent=1 // pred_check
      _
    $region47: #{decoder_forward.1} parent=1 // pred_check_branch
      %1274 = sbr.rel (0) target = $region49
    $region48: #{decoder_forward.1} parent=1 // pred_region
      %s1276 = ssub.s32 16, 16
      %1277 = vsyncadd [#allocation9], %s1276
      %s1279 = sshll.u32 [#allocation8], 4
      %s1280 = int_to_ptr.vmem [resolvable:$true] %s1279
      %1282 = dma.vmem_to_hbm [thread:$0]  %s1280, 16, %s12, [#allocation9]
    $region49: #{decoder_forward.1} parent=1 // pred_fallthru
      _
    // Predicated region
    $region50: #{decoder_forward.1} parent=1 // pred_check
      _
    $region51: #{decoder_forward.1} parent=1 // pred_check_branch
      %1284 = sbr.rel (0) target = $region53
    $region52: #{decoder_forward.1} parent=1 // pred_region
      %s1286 = ssub.s32 16, 16
      %1287 = vsyncadd [#allocation9], %s1286
      %s1289 = sshll.u32 [#allocation10], 4
      %s1290 = int_to_ptr.vmem [resolvable:$true] %s1289
      %1292 = dma.vmem_to_hbm [thread:$0]  %s1290, 16, %s13, [#allocation9]
    $region53: #{decoder_forward.1} parent=1 // pred_fallthru
      _
    // Predicated region
    $region54: #{decoder_forward.1} parent=1 // pred_check
      _
    $region55: #{decoder_forward.1} parent=1 // pred_check_branch
      %1294 = sbr.rel (0) target = $region57
    $region56: #{decoder_forward.1} parent=1 // pred_region
      %1295 = dma.done [#allocation7], 128
    $region57: #{decoder_forward.1} parent=1 // pred_fallthru
      _
    // Predicated region
    $region58: #{decoder_forward.1} parent=1 // pred_check
      _
    $region59: #{decoder_forward.1} parent=1 // pred_check_branch
      %1297 = sbr.rel (0) target = $region61
    $region60: #{decoder_forward.1} parent=1 // pred_region
      %1298 = dma.done [#allocation9], 16
    $region61: #{decoder_forward.1} parent=1 // pred_fallthru
      _
    // Predicated region
    $region62: #{decoder_forward.1} parent=1 // pred_check
      _
    $region63: #{decoder_forward.1} parent=1 // pred_check_branch
      %1300 = sbr.rel (0) target = $region65
    $region64: #{decoder_forward.1} parent=1 // pred_region
      %1301 = dma.done [#allocation9], 16
    $region65: #{decoder_forward.1} parent=1 // pred_fallthru
      _
    %1302 = vsyncpa [#allocation7], 1
    %1303 = vsyncpa [#allocation9], 1

</llo_original>
